<compile_context>
chip_gen: v7x
topology: tpu7x:2x2x1
jax: 0.10.0
libtpu: 0.0.40
codegen_flags: <defaults>
</compile_context>

<pallas_src>
import functools

import jax
import jax.numpy as jnp
from jax import lax
from jax.experimental import pallas as pl
from jax.experimental.pallas import tpu as pltpu

P_DROP = 0.1

# murmur3 fmix32 / golden-ratio constants as signed-int32 Python ints
# (wrapping int32 arithmetic in the kernel).
_C1 = -2048144789     # 0x85EBCA6B
_C2 = -1028477387     # 0xC2B2AE35
_GOLD = -1640531527   # 0x9E3779B9
_C3 = 0x27D4EB2F


def _wrap_i32(v):
    """Wrap a Python int to the signed-int32 value with the same low 32 bits."""
    v &= 0xFFFFFFFF
    return v - (1 << 32) if v >= (1 << 31) else v


def _fmix32(h):
    # murmur3 finalizer; logical right shifts emulated via arithmetic
    # shift + mask so everything stays in (well-supported) signed int32.
    h = h ^ ((h >> 16) & 0xFFFF)
    h = h * _C1
    h = h ^ ((h >> 13) & 0x7FFFF)
    h = h * _C2
    h = h ^ ((h >> 16) & 0xFFFF)
    return h


def _dropout_kernel(seed_ref, x_ref, o_ref, *, p, tile_rows, hidden):
    tile = pl.program_id(0)
    seed = seed_ref[0]

    # Hash input is idx * GOLD + seed * C2 + C3 with idx = row*hidden + col
    # (global element counter -> tiling/order-independent randomness), but
    # computed separably: row-term (tile_rows, 1) + col-term (1, hidden),
    # so the only full-tile int32 multiplies are the two inside fmix32.
    hg = _wrap_i32(hidden * _GOLD)  # (hidden * GOLD) mod 2^32, as signed int32
    row = lax.broadcasted_iota(jnp.int32, (tile_rows, 1), 0) + tile * tile_rows
    row_term = row * hg + (seed * _C2 + _C3)                      # (tile_rows, 1)
    col_term = lax.broadcasted_iota(jnp.int32, (1, hidden), 1) * _GOLD  # (1, H)

    h = _fmix32(row_term + col_term)          # broadcast to (tile_rows, hidden)
    r = h & 0x7FFFFFFF                        # uniform in [0, 2^31)
    threshold = int(round(p * (1 << 31)))     # drop iff r < threshold
    keep = r >= threshold

    scale = 1.0 / (1.0 - p)
    x = x_ref[...]
    o_ref[...] = jnp.where(keep, x * scale, 0.0)


def _pick_tile_rows(rows, hidden, itemsize):
    # Prefer ~4 grid steps (2 per TC on v7x -> DMA/compute overlap via
    # double-buffering) while keeping each block comfortably inside scoped
    # VMEM on every chip generation.
    max_block_bytes = 8 << 20
    for g in (4, 3, 2, 1):
        if rows % g == 0:
            tr = rows // g
            if tr % 8 == 0 and tr * hidden * itemsize <= max_block_bytes:
                return tr
    return rows


def pallas_dropout(x, seed, p=P_DROP, tile_rows=None):
    """Training-mode dropout. x: (B, S, H), H a multiple of 128."""
    B, S, H = x.shape
    R = B * S
    x2d = x.reshape(R, H)
    if tile_rows is None:
        tile_rows = _pick_tile_rows(R, H, x.dtype.itemsize)
    assert R % tile_rows == 0 and tile_rows % 8 == 0 and H % 128 == 0, \
        "shape must tile cleanly onto (8, 128) vregs"

    seed_arr = jnp.asarray([seed], dtype=jnp.int32)
    kernel = functools.partial(_dropout_kernel, p=p, tile_rows=tile_rows, hidden=H)

    out2d = pl.pallas_call(
        kernel,
        out_shape=jax.ShapeDtypeStruct((R, H), x.dtype),
        grid_spec=pltpu.PrefetchScalarGridSpec(
            num_scalar_prefetch=1,
            grid=(R // tile_rows,),
            in_specs=[pl.BlockSpec((tile_rows, H), lambda i, seed: (i, 0))],
            out_specs=pl.BlockSpec((tile_rows, H), lambda i, seed: (i, 0)),
        ),
        compiler_params=pltpu.CompilerParams(
            dimension_semantics=("parallel",),  # counter-based RNG -> order-free
        ),
    )(seed_arr, x2d)
    return out2d.reshape(B, S, H)


if __name__ == "__main__":
    key = jax.random.PRNGKey(0)
    x280 = jax.random.normal(key, (1, 384, 768), dtype=jnp.float32)

    x281 = pallas_dropout(x280, seed=0, p=P_DROP)
    jax.block_until_ready(x281)

    # Sanity checks: shape/dtype preserved, surviving elements scaled by
    # exactly 1/(1-p), empirical drop rate close to p.
    assert x281.shape == x280.shape and x281.dtype == x280.dtype
    kept = x281 != 0.0
    scale = 1.0 / (1.0 - P_DROP)
    ratio = jnp.where(kept, x281 / (x280 * scale), 1.0)
    assert bool(jnp.allclose(ratio, 1.0, atol=1e-5))
    drop_frac = 1.0 - float(jnp.mean(kept.astype(jnp.float32)))
    assert abs(drop_frac - P_DROP) < 0.03, drop_frac

    print("KERNEL_OK")
</pallas_src>

<mosaic_0001>
module attributes {stable_mosaic.version = 11 : i64} {
  func.func @_dropout_kernel(%arg0: i32, %arg1: memref<1xi32, #tpu.memory_space<smem>>, %arg2: memref<96x768xf32, #tpu.memory_space<vmem>>, %arg3: memref<96x768xf32, #tpu.memory_space<vmem>>) attributes {dimension_semantics = [#tpu.dimension_semantics<parallel>], iteration_bounds = array<i64: 4>, scalar_prefetch = 1 : i64, scratch_operands = 0 : i64, tpu.core_type = #tpu.core_type<tc>, window_params = [{transform_indices = @transform_0, window_bounds = array<i64: 96, 768>}, {transform_indices = @transform_1, window_bounds = array<i64: 96, 768>}]} {
    %c0 = arith.constant 0 : index
    %0 = memref.load %arg1[%c0] : memref<1xi32, #tpu.memory_space<smem>>
    %1 = tpu.iota {dimensions = array<i32: 0>} : vector<96x1xi32>
    %c96_i32 = arith.constant 96 : i32
    %2 = arith.muli %arg0, %c96_i32 : i32
    %3 = vector.broadcast %2 : i32 to vector<96x1xi32>
    %4 = arith.addi %1, %3 : vector<96x1xi32>
    %c-1502795008_i32 = arith.constant -1502795008 : i32
    %5 = vector.broadcast %c-1502795008_i32 : i32 to vector<96x1xi32>
    %6 = arith.muli %4, %5 : vector<96x1xi32>
    %c-1028477387_i32 = arith.constant -1028477387 : i32
    %7 = arith.muli %0, %c-1028477387_i32 : i32
    %c668265263_i32 = arith.constant 668265263 : i32
    %8 = arith.addi %7, %c668265263_i32 : i32
    %9 = vector.broadcast %8 : i32 to vector<96x1xi32>
    %10 = arith.addi %6, %9 : vector<96x1xi32>
    %11 = tpu.iota {dimensions = array<i32: 1>} : vector<1x768xi32>
    %c-1640531527_i32 = arith.constant -1640531527 : i32
    %12 = vector.broadcast %c-1640531527_i32 : i32 to vector<1x768xi32>
    %13 = arith.muli %11, %12 : vector<1x768xi32>
    %14 = vector.broadcast %10 : vector<96x1xi32> to vector<96x768xi32>
    %15 = vector.broadcast %13 : vector<1x768xi32> to vector<96x768xi32>
    %16 = arith.addi %14, %15 : vector<96x768xi32>
    %c16_i32 = arith.constant 16 : i32
    %17 = vector.broadcast %c16_i32 : i32 to vector<96x768xi32>
    %18 = arith.shrsi %16, %17 : vector<96x768xi32>
    %c65535_i32 = arith.constant 65535 : i32
    %19 = vector.broadcast %c65535_i32 : i32 to vector<96x768xi32>
    %20 = arith.andi %18, %19 : vector<96x768xi32>
    %21 = arith.xori %16, %20 : vector<96x768xi32>
    %c-2048144789_i32 = arith.constant -2048144789 : i32
    %22 = vector.broadcast %c-2048144789_i32 : i32 to vector<96x768xi32>
    %23 = arith.muli %21, %22 : vector<96x768xi32>
    %c13_i32 = arith.constant 13 : i32
    %24 = vector.broadcast %c13_i32 : i32 to vector<96x768xi32>
    %25 = arith.shrsi %23, %24 : vector<96x768xi32>
    %c524287_i32 = arith.constant 524287 : i32
    %26 = vector.broadcast %c524287_i32 : i32 to vector<96x768xi32>
    %27 = arith.andi %25, %26 : vector<96x768xi32>
    %28 = arith.xori %23, %27 : vector<96x768xi32>
    %c-1028477387_i32_0 = arith.constant -1028477387 : i32
    %29 = vector.broadcast %c-1028477387_i32_0 : i32 to vector<96x768xi32>
    %30 = arith.muli %28, %29 : vector<96x768xi32>
    %c16_i32_1 = arith.constant 16 : i32
    %31 = vector.broadcast %c16_i32_1 : i32 to vector<96x768xi32>
    %32 = arith.shrsi %30, %31 : vector<96x768xi32>
    %c65535_i32_2 = arith.constant 65535 : i32
    %33 = vector.broadcast %c65535_i32_2 : i32 to vector<96x768xi32>
    %34 = arith.andi %32, %33 : vector<96x768xi32>
    %35 = arith.xori %30, %34 : vector<96x768xi32>
    %c2147483647_i32 = arith.constant 2147483647 : i32
    %36 = vector.broadcast %c2147483647_i32 : i32 to vector<96x768xi32>
    %37 = arith.andi %35, %36 : vector<96x768xi32>
    %c214748365_i32 = arith.constant 214748365 : i32
    %38 = vector.broadcast %c214748365_i32 : i32 to vector<96x768xi32>
    %39 = arith.cmpi sge, %37, %38 : vector<96x768xi32>
    %c0_3 = arith.constant 0 : index
    %c0_4 = arith.constant 0 : index
    %40 = vector.load %arg2[%c0_3, %c0_4] : memref<96x768xf32, #tpu.memory_space<vmem>>, vector<96x768xf32>
    %cst = arith.constant 1.11111116 : f32
    %41 = vector.broadcast %cst : f32 to vector<96x768xf32>
    %42 = arith.mulf %40, %41 : vector<96x768xf32>
    %cst_5 = arith.constant 0.000000e+00 : f32
    %43 = vector.broadcast %cst_5 : f32 to vector<96x768xf32>
    %44 = arith.select %39, %42, %43 : vector<96x768xi1>, vector<96x768xf32>
    %c0_6 = arith.constant 0 : index
    %c0_7 = arith.constant 0 : index
    %45 = vector.load %arg3[%c0_6, %c0_7] : memref<96x768xf32, #tpu.memory_space<vmem>>, vector<96x768xf32>
    tpu.vector_store %arg3[%c0_6, %c0_7], %44 {strides = array<i32>} : memref<96x768xf32, #tpu.memory_space<vmem>>, vector<96x768xf32>,
    return
  }
  func.func @transform_0(%arg0: i32, %arg1: memref<1xi32, #tpu.memory_space<smem>>) -> (i32, i32) {
    %c0_i32 = arith.constant 0 : i32
    %c0_i32_0 = arith.constant 0 : i32
    return %arg0, %c0_i32 : i32, i32
  }
  func.func @transform_1(%arg0: i32, %arg1: memref<1xi32, #tpu.memory_space<smem>>) -> (i32, i32) {
    %c0_i32 = arith.constant 0 : i32
    %c0_i32_0 = arith.constant 0 : i32
    return %arg0, %c0_i32 : i32, i32
  }
}

</mosaic_0001>

<llo_original>
// kernel: tpu_custom_call.1
$region0: #{tpu_custom_call.1}
  #allocation0 [shape = 'u32[]', space=smem, size = 0x4, offset = 0x4, fixed_abs, tag = 'smem constant byte address 0x4 - core index']
  #allocation1 [shape = 'u32[144,128]{1,0:T(1,128)}', space=vmem, size = 0x12000, scoped, tag = 'internal scratch']
  #allocation2 [shape = 's32[1]{0}', space=sflag, size = 0x4, scoped, tag = 'scoped memory for tpu_custom_call.1']
  #allocation3 [shape = 's32[1]{0:T(128)S(6)}', space=smem, size = 0x200, scoped, tag = 'prefetched SMEM operand 0']
  %s0 = inlined_call_operand.<no memory space> [shape: s32[1], index: 0, kind: input, shape index: {}]
  %s1 = inlined_call_operand.hbm [shape: f32[384,768], index: 1, kind: input, shape index: {}]
  %s2 = inlined_call_operand.hbm [shape: f32[384,768], index: 2, kind: output, shape index: {}]
  %s3 = sld [smem:[#allocation0]]
  $region41: #{tpu_custom_call.1} parent=0
    _
  %s5 = ssub.s32 1, %s3
  %s6 = scalar_select 0, %s5, %s3
  %7 = sst [smem:[#allocation3]] %s0
  $region1: #{tpu_custom_call.1} parent=0
    #allocation4 [shape = 'u8[589824]{0}', space=vmem, size = 0x90000, scoped, tag = 'input window, operand 1']
    #allocation5 [shape = 's32[2]{0}', space=sflag, size = 0x8, scoped, tag = 'scoped memory for tpu_custom_call.1']
    #allocation6 [shape = 's32[2]{0}', space=sflag, size = 0x8, scoped, tag = 'scoped memory for tpu_custom_call.1']
    #allocation7 [shape = 'u8[589824]{0}', space=vmem, size = 0x90000, scoped, tag = 'output window, operand 0']
    %8 = vsyncpa [#allocation5], 0
    %s9 = scalar_lea.sflag [#allocation5], 1
    %10 = vsyncpa %s9, 0
    %11 = vsyncpa [#allocation6], 0
    %s12 = scalar_lea.sflag [#allocation6], 1
    %13 = vsyncpa %s12, 0
    loop: start=0, step=1, limit=6
    $region2: #{tpu_custom_call.1} parent=1 // loop_pre_header
      _
    $region3: #{tpu_custom_call.1} parent=1 // loop_header
      %s15 = sphi 0, %s19
      %p16 = scmp.ge.s32.totalorder %s15, 6
      %s25 = sphi 0, %s27
      %s28 = sphi 0, %s25
      %s29 = sphi 0, %s28
      %s45 = sphi 0, %s29
      %s51 = sphi 0, %s53
      %s54 = sphi 0, %s51
      %s55 = sphi 0, %s54
      %s71 = sphi 0, %s55
    $region4: #{tpu_custom_call.1} parent=1 // loop_header_branch
      %18 = sbr.rel (%p16) target = $region8
    $region5: #{tpu_custom_call.1} parent=1 // loop_body
      %s20 = ssub.s32 %s15, 1
      %s21 = ssub.s32 %s15, 2
      %s22 = sadd.s32 %s15, 1
      %s23 = ssub.s32 %s15, %s22
      %p24 = scmp.eq.s32.totalorder %s23, 0
      %s26 = sadd.s32 %s25, 1
      %s27 = scalar_select %p24, %s25, %s26
      %p30 = pneg %p24
      %p31 = scmp.eq.s32.totalorder %s15, 3
      %p32 = por %p30, %p31
      %p33 = scmp.ne.s32.totalorder %s25, %s28
      %p34 = scmp.eq.s32.totalorder %s15, 0
      %p35 = por %p33, %p34
      %p36 = scmp.ne.s32.totalorder %s25, %s28
      %p37 = scmp.eq.s32.totalorder %s20, 3
      %p38 = por %p36, %p37
      %p39 = scmp.ne.s32.totalorder %s28, %s29
      %p40 = scmp.eq.s32.totalorder %s20, 0
      %p41 = por %p39, %p40
      %p42 = scmp.ne.s32.totalorder %s28, %s29
      %p43 = scmp.eq.s32.totalorder %s21, 3
      %p44 = por %p42, %p43
      %p46 = scmp.ne.s32.totalorder %s29, %s45
      %p47 = scmp.eq.s32.totalorder %s21, 0
      %p48 = por %p46, %p47
      %s49 = ssub.s32 %s15, %s22
      %p50 = scmp.eq.s32.totalorder %s49, 0
      %s52 = sadd.s32 %s51, 1
      %s53 = scalar_select %p50, %s51, %s52
      %p56 = pneg %p50
      %p57 = scmp.eq.s32.totalorder %s15, 3
      %p58 = por %p56, %p57
      %p59 = scmp.ne.s32.totalorder %s51, %s54
      %p60 = scmp.eq.s32.totalorder %s15, 0
      %p61 = por %p59, %p60
      %p62 = scmp.ne.s32.totalorder %s51, %s54
      %p63 = scmp.eq.s32.totalorder %s20, 3
      %p64 = por %p62, %p63
      %p65 = scmp.ne.s32.totalorder %s54, %s55
      %p66 = scmp.eq.s32.totalorder %s20, 0
      %p67 = por %p65, %p66
      %p68 = scmp.ne.s32.totalorder %s54, %s55
      %p69 = scmp.eq.s32.totalorder %s21, 3
      %p70 = por %p68, %p69
      %p72 = scmp.ne.s32.totalorder %s55, %s71
      %p73 = scmp.eq.s32.totalorder %s21, 0
      %p74 = por %p72, %p73
      %p75 = scmp.le.s32.totalorder 1, %s15
      %p76 = scmp.lt.s32.totalorder %s15, 5
      %p77 = pnand %p75, %p76
      %p78 = pneg %p77
      // Predicated region
      $region9: #{tpu_custom_call.1} parent=5 // pred_check
        _
      $region10: #{tpu_custom_call.1} parent=5 // pred_check_branch
        %80 = sbr.rel (%p77) target = $region12
      $region11: #{tpu_custom_call.1} parent=5 // pred_region
        %s81 = ssub.s32 %s15, 1
      $region12: #{tpu_custom_call.1} parent=5 // pred_fallthru
        _
      %p82 = scmp.lt.s32.totalorder %s15, 4
      // Predicated region
      $region13: #{tpu_custom_call.1} parent=5 // pred_check
        %p83 = pneg %p82
      $region14: #{tpu_custom_call.1} parent=5 // pred_check_branch
        %85 = sbr.rel (%p83) target = $region16
      $region15: #{tpu_custom_call.1} parent=5 // pred_region
        // Predicated region
        $region17: #{tpu_custom_call.1} parent=15 // pred_check
          %p86 = pneg %p35
        $region18: #{tpu_custom_call.1} parent=15 // pred_check_branch
          %88 = sbr.rel (%p86) target = $region20
        $region19: #{tpu_custom_call.1} parent=15 // pred_region
          %s89 = sand.u32 %s25, 1
          %s90 = scalar_lea.sflag [#allocation5], %s89
          %s91 = sand.u32 %s25, 1
          %s92 = smul.addr %s91, 576
          %s93 = scalar_lea.vmem [#allocation4], %s92
          %s94 = smul.u32 12, %s15
          %s96 = ssub.s32 9216, 9216
          %97 = vsyncadd %s90, %s96
          %s98 = smul.addr %s94, 6
          %s99 = smul.addr %s98, 128
          %s100 = scalar_lea.hbm %s1, %s99
          %s101 = sshll.u32 %s93, 4
          %s102 = int_to_ptr.vmem [resolvable:$true] %s101
          %107 = dma.hbm_to_vmem [thread:$0]  %s100, 9216, %s102, %s90, 768, 768, 48
        $region20: #{tpu_custom_call.1} parent=15 // pred_fallthru
          _
      $region16: #{tpu_custom_call.1} parent=5 // pred_fallthru
        _
      %p108 = scmp.le.s32.totalorder 1, %s15
      %p109 = scmp.lt.s32.totalorder %s15, 5
      %p110 = pnand %p108, %p109
      %p111 = pneg %p110
      // Predicated region
      $region21: #{tpu_custom_call.1} parent=5 // pred_check
        _
      $region22: #{tpu_custom_call.1} parent=5 // pred_check_branch
        %113 = sbr.rel (%p110) target = $region24
      $region23: #{tpu_custom_call.1} parent=5 // pred_region
        %s114 = ssub.s32 %s15, 1
        %s115 = sand.u32 %s28, 1
        %s116 = scalar_lea.sflag [#allocation5], %s115
        %s117 = sand.u32 %s28, 1
        %s118 = smul.addr %s117, 576
        %s119 = scalar_lea.vmem [#allocation4], %s118
        // Predicated region
        $region25: #{tpu_custom_call.1} parent=23 // pred_check
          %p120 = pneg %p41
        $region26: #{tpu_custom_call.1} parent=23 // pred_check_branch
          %122 = sbr.rel (%p120) target = $region28
        $region27: #{tpu_custom_call.1} parent=23 // pred_region
          %123 = dma.done %s116, 9216
        $region28: #{tpu_custom_call.1} parent=23 // pred_fallthru
          _
        %s124 = sand.u32 %s28, 1
        %s125 = scalar_lea.sflag [#allocation5], %s124
        %s126 = sand.u32 %s28, 1
        %s127 = smul.addr %s126, 576
        %s128 = scalar_lea.vmem [#allocation4], %s127
        %p129 = pneg %p41
        %p130 = pneg %p38
        %p131 = pneg %p67
        %p132 = pneg %p64
        %s133 = sand.u32 %s54, 1
        %s134 = scalar_lea.sflag [#allocation6], %s133
        %s135 = sand.u32 %s54, 1
        %s136 = smul.addr %s135, 576
        %s137 = scalar_lea.vmem [#allocation7], %s136
        %s138 = smul.u32 12, %s20
        %s139 = smul.u32 12, %s20
        %s140 = sld [smem:[#allocation3]]
        %v141 = vlaneseq
        %v142 = vshrl.u32 %v141, 7
        %v143 = vadd.s32 %v142, 8
        %v144 = vadd.s32 %v142, 16
        %v145 = vadd.s32 %v142, 24
        %v146 = vadd.s32 %v142, 32
        %v147 = vadd.s32 %v142, 40
        %v148 = vadd.s32 %v142, 48
        %v149 = vadd.s32 %v142, 56
        %v150 = vadd.s32 %v142, 64
        %v151 = vadd.s32 %v142, 72
        %v152 = vadd.s32 %v142, 80
        %v153 = vadd.s32 %v142, 88
        %s154 = smul.u32 %s20, 96
        %v155 = vstv %s154
        %v156 = vadd.s32 %v142, %v155
        %v157 = vadd.s32 %v143, %v155
        %v158 = vadd.s32 %v144, %v155
        %v159 = vadd.s32 %v145, %v155
        %v160 = vadd.s32 %v146, %v155
        %v161 = vadd.s32 %v147, %v155
        %v162 = vadd.s32 %v148, %v155
        %v163 = vadd.s32 %v149, %v155
        %v164 = vadd.s32 %v150, %v155
        %v165 = vadd.s32 %v151, %v155
        %v166 = vadd.s32 %v152, %v155
        %v167 = vadd.s32 %v153, %v155
        %v168 = vmul.u32 %v156, 2792172288
        %v169 = vmul.u32 %v157, 2792172288
        %v170 = vmul.u32 %v158, 2792172288
        %v171 = vmul.u32 %v159, 2792172288
        %v172 = vmul.u32 %v160, 2792172288
        %v173 = vmul.u32 %v161, 2792172288
        %v174 = vmul.u32 %v162, 2792172288
        %v175 = vmul.u32 %v163, 2792172288
        %v176 = vmul.u32 %v164, 2792172288
        %v177 = vmul.u32 %v165, 2792172288
        %v178 = vmul.u32 %v166, 2792172288
        %v179 = vmul.u32 %v167, 2792172288
        %s180 = smul.u32 %s140, 3266489909
        %s181 = sadd.s32 %s180, 668265263
        %v182 = vstv %s181
        %v183 = vadd.s32 %v168, %v182
        %v184 = vadd.s32 %v169, %v182
        %v185 = vadd.s32 %v170, %v182
        %v186 = vadd.s32 %v171, %v182
        %v187 = vadd.s32 %v172, %v182
        %v188 = vadd.s32 %v173, %v182
        %v189 = vadd.s32 %v174, %v182
        %v190 = vadd.s32 %v175, %v182
        %v191 = vadd.s32 %v176, %v182
        %v192 = vadd.s32 %v177, %v182
        %v193 = vadd.s32 %v178, %v182
        %v194 = vadd.s32 %v179, %v182
        %v195 = vlaneseq
        %v196 = vand.u32 %v195, 127
        %v197 = vadd.s32 %v196, 128
        %v198 = vadd.s32 %v196, 256
        %v199 = vadd.s32 %v196, 384
        %v200 = vadd.s32 %v196, 512
        %v201 = vadd.s32 %v196, 640
        %v202 = vmul.u32 %v196, 2654435769
        %v203 = vmul.u32 %v197, 2654435769
        %v204 = vmul.u32 %v198, 2654435769
        %v205 = vmul.u32 %v199, 2654435769
        %v206 = vmul.u32 %v200, 2654435769
        %v207 = vmul.u32 %v201, 2654435769
        %v208 = vadd.s32 %v183, %v202
        %v209 = vadd.s32 %v183, %v203
        %v210 = vadd.s32 %v183, %v204
        %v211 = vadd.s32 %v183, %v205
        %v212 = vadd.s32 %v183, %v206
        %v213 = vadd.s32 %v183, %v207
        %v214 = vadd.s32 %v184, %v202
        %v215 = vadd.s32 %v184, %v203
        %v216 = vadd.s32 %v184, %v204
        %v217 = vadd.s32 %v184, %v205
        %v218 = vadd.s32 %v184, %v206
        %v219 = vadd.s32 %v184, %v207
        %v220 = vadd.s32 %v185, %v202
        %v221 = vadd.s32 %v185, %v203
        %v222 = vadd.s32 %v185, %v204
        %v223 = vadd.s32 %v185, %v205
        %v224 = vadd.s32 %v185, %v206
        %v225 = vadd.s32 %v185, %v207
        %v226 = vadd.s32 %v186, %v202
        %v227 = vadd.s32 %v186, %v203
        %v228 = vadd.s32 %v186, %v204
        %v229 = vadd.s32 %v186, %v205
        %v230 = vadd.s32 %v186, %v206
        %v231 = vadd.s32 %v186, %v207
        %v232 = vadd.s32 %v187, %v202
        %v233 = vadd.s32 %v187, %v203
        %v234 = vadd.s32 %v187, %v204
        %v235 = vadd.s32 %v187, %v205
        %v236 = vadd.s32 %v187, %v206
        %v237 = vadd.s32 %v187, %v207
        %v238 = vadd.s32 %v188, %v202
        %v239 = vadd.s32 %v188, %v203
        %v240 = vadd.s32 %v188, %v204
        %v241 = vadd.s32 %v188, %v205
        %v242 = vadd.s32 %v188, %v206
        %v243 = vadd.s32 %v188, %v207
        %v244 = vadd.s32 %v189, %v202
        %v245 = vadd.s32 %v189, %v203
        %v246 = vadd.s32 %v189, %v204
        %v247 = vadd.s32 %v189, %v205
        %v248 = vadd.s32 %v189, %v206
        %v249 = vadd.s32 %v189, %v207
        %v250 = vadd.s32 %v190, %v202
        %v251 = vadd.s32 %v190, %v203
        %v252 = vadd.s32 %v190, %v204
        %v253 = vadd.s32 %v190, %v205
        %v254 = vadd.s32 %v190, %v206
        %v255 = vadd.s32 %v190, %v207
        %v256 = vadd.s32 %v191, %v202
        %v257 = vadd.s32 %v191, %v203
        %v258 = vadd.s32 %v191, %v204
        %v259 = vadd.s32 %v191, %v205
        %v260 = vadd.s32 %v191, %v206
        %v261 = vadd.s32 %v191, %v207
        %v262 = vadd.s32 %v192, %v202
        %v263 = vadd.s32 %v192, %v203
        %v264 = vadd.s32 %v192, %v204
        %v265 = vadd.s32 %v192, %v205
        %v266 = vadd.s32 %v192, %v206
        %v267 = vadd.s32 %v192, %v207
        %v268 = vadd.s32 %v193, %v202
        %v269 = vadd.s32 %v193, %v203
        %v270 = vadd.s32 %v193, %v204
        %v271 = vadd.s32 %v193, %v205
        %v272 = vadd.s32 %v193, %v206
        %v273 = vadd.s32 %v193, %v207
        %v274 = vadd.s32 %v194, %v202
        %v275 = vadd.s32 %v194, %v203
        %v276 = vadd.s32 %v194, %v204
        %v277 = vadd.s32 %v194, %v205
        %v278 = vadd.s32 %v194, %v206
        %v279 = vadd.s32 %v194, %v207
        %v280 = vshra.s32 %v208, 16
        %v281 = vshra.s32 %v209, 16
        %v282 = vshra.s32 %v210, 16
        %v283 = vshra.s32 %v211, 16
        %v284 = vshra.s32 %v212, 16
        %v285 = vshra.s32 %v213, 16
        %v286 = vshra.s32 %v214, 16
        %v287 = vshra.s32 %v215, 16
        %v288 = vshra.s32 %v216, 16
        %v289 = vshra.s32 %v217, 16
        %v290 = vshra.s32 %v218, 16
        %v291 = vshra.s32 %v219, 16
        %v292 = vshra.s32 %v220, 16
        %v293 = vshra.s32 %v221, 16
        %v294 = vshra.s32 %v222, 16
        %v295 = vshra.s32 %v223, 16
        %v296 = vshra.s32 %v224, 16
        %v297 = vshra.s32 %v225, 16
        %v298 = vshra.s32 %v226, 16
        %v299 = vshra.s32 %v227, 16
        %v300 = vshra.s32 %v228, 16
        %v301 = vshra.s32 %v229, 16
        %v302 = vshra.s32 %v230, 16
        %v303 = vshra.s32 %v231, 16
        %v304 = vshra.s32 %v232, 16
        %v305 = vshra.s32 %v233, 16
        %v306 = vshra.s32 %v234, 16
        %v307 = vshra.s32 %v235, 16
        %v308 = vshra.s32 %v236, 16
        %v309 = vshra.s32 %v237, 16
        %v310 = vshra.s32 %v238, 16
        %v311 = vshra.s32 %v239, 16
        %v312 = vshra.s32 %v240, 16
        %v313 = vshra.s32 %v241, 16
        %v314 = vshra.s32 %v242, 16
        %v315 = vshra.s32 %v243, 16
        %v316 = vshra.s32 %v244, 16
        %v317 = vshra.s32 %v245, 16
        %v318 = vshra.s32 %v246, 16
        %v319 = vshra.s32 %v247, 16
        %v320 = vshra.s32 %v248, 16
        %v321 = vshra.s32 %v249, 16
        %v322 = vshra.s32 %v250, 16
        %v323 = vshra.s32 %v251, 16
        %v324 = vshra.s32 %v252, 16
        %v325 = vshra.s32 %v253, 16
        %v326 = vshra.s32 %v254, 16
        %v327 = vshra.s32 %v255, 16
        %v328 = vshra.s32 %v256, 16
        %v329 = vshra.s32 %v257, 16
        %v330 = vshra.s32 %v258, 16
        %v331 = vshra.s32 %v259, 16
        %v332 = vshra.s32 %v260, 16
        %v333 = vshra.s32 %v261, 16
        %v334 = vshra.s32 %v262, 16
        %v335 = vshra.s32 %v263, 16
        %v336 = vshra.s32 %v264, 16
        %v337 = vshra.s32 %v265, 16
        %v338 = vshra.s32 %v266, 16
        %v339 = vshra.s32 %v267, 16
        %v340 = vshra.s32 %v268, 16
        %v341 = vshra.s32 %v269, 16
        %v342 = vshra.s32 %v270, 16
        %v343 = vshra.s32 %v271, 16
        %v344 = vshra.s32 %v272, 16
        %v345 = vshra.s32 %v273, 16
        %v346 = vshra.s32 %v274, 16
        %v347 = vshra.s32 %v275, 16
        %v348 = vshra.s32 %v276, 16
        %v349 = vshra.s32 %v277, 16
        %v350 = vshra.s32 %v278, 16
        %v351 = vshra.s32 %v279, 16
        %v352 = vand.u32 %v280, 65535
        %v353 = vand.u32 %v281, 65535
        %v354 = vand.u32 %v282, 65535
        %v355 = vand.u32 %v283, 65535
        %v356 = vand.u32 %v284, 65535
        %v357 = vand.u32 %v285, 65535
        %v358 = vand.u32 %v286, 65535
        %v359 = vand.u32 %v287, 65535
        %v360 = vand.u32 %v288, 65535
        %v361 = vand.u32 %v289, 65535
        %v362 = vand.u32 %v290, 65535
        %v363 = vand.u32 %v291, 65535
        %v364 = vand.u32 %v292, 65535
        %v365 = vand.u32 %v293, 65535
        %v366 = vand.u32 %v294, 65535
        %v367 = vand.u32 %v295, 65535
        %v368 = vand.u32 %v296, 65535
        %v369 = vand.u32 %v297, 65535
        %v370 = vand.u32 %v298, 65535
        %v371 = vand.u32 %v299, 65535
        %v372 = vand.u32 %v300, 65535
        %v373 = vand.u32 %v301, 65535
        %v374 = vand.u32 %v302, 65535
        %v375 = vand.u32 %v303, 65535
        %v376 = vand.u32 %v304, 65535
        %v377 = vand.u32 %v305, 65535
        %v378 = vand.u32 %v306, 65535
        %v379 = vand.u32 %v307, 65535
        %v380 = vand.u32 %v308, 65535
        %v381 = vand.u32 %v309, 65535
        %v382 = vand.u32 %v310, 65535
        %v383 = vand.u32 %v311, 65535
        %v384 = vand.u32 %v312, 65535
        %v385 = vand.u32 %v313, 65535
        %v386 = vand.u32 %v314, 65535
        %v387 = vand.u32 %v315, 65535
        %v388 = vand.u32 %v316, 65535
        %v389 = vand.u32 %v317, 65535
        %v390 = vand.u32 %v318, 65535
        %v391 = vand.u32 %v319, 65535
        %v392 = vand.u32 %v320, 65535
        %v393 = vand.u32 %v321, 65535
        %v394 = vand.u32 %v322, 65535
        %v395 = vand.u32 %v323, 65535
        %v396 = vand.u32 %v324, 65535
        %v397 = vand.u32 %v325, 65535
        %v398 = vand.u32 %v326, 65535
        %v399 = vand.u32 %v327, 65535
        %v400 = vand.u32 %v328, 65535
        %v401 = vand.u32 %v329, 65535
        %v402 = vand.u32 %v330, 65535
        %v403 = vand.u32 %v331, 65535
        %v404 = vand.u32 %v332, 65535
        %v405 = vand.u32 %v333, 65535
        %v406 = vand.u32 %v334, 65535
        %v407 = vand.u32 %v335, 65535
        %v408 = vand.u32 %v336, 65535
        %v409 = vand.u32 %v337, 65535
        %v410 = vand.u32 %v338, 65535
        %v411 = vand.u32 %v339, 65535
        %v412 = vand.u32 %v340, 65535
        %v413 = vand.u32 %v341, 65535
        %v414 = vand.u32 %v342, 65535
        %v415 = vand.u32 %v343, 65535
        %v416 = vand.u32 %v344, 65535
        %v417 = vand.u32 %v345, 65535
        %v418 = vand.u32 %v346, 65535
        %v419 = vand.u32 %v347, 65535
        %v420 = vand.u32 %v348, 65535
        %v421 = vand.u32 %v349, 65535
        %v422 = vand.u32 %v350, 65535
        %v423 = vand.u32 %v351, 65535
        %v424 = vxor.u32 %v208, %v352
        %v425 = vxor.u32 %v209, %v353
        %v426 = vxor.u32 %v210, %v354
        %v427 = vxor.u32 %v211, %v355
        %v428 = vxor.u32 %v212, %v356
        %v429 = vxor.u32 %v213, %v357
        %v430 = vxor.u32 %v214, %v358
        %v431 = vxor.u32 %v215, %v359
        %v432 = vxor.u32 %v216, %v360
        %v433 = vxor.u32 %v217, %v361
        %v434 = vxor.u32 %v218, %v362
        %v435 = vxor.u32 %v219, %v363
        %v436 = vxor.u32 %v220, %v364
        %v437 = vxor.u32 %v221, %v365
        %v438 = vxor.u32 %v222, %v366
        %v439 = vxor.u32 %v223, %v367
        %v440 = vxor.u32 %v224, %v368
        %v441 = vxor.u32 %v225, %v369
        %v442 = vxor.u32 %v226, %v370
        %v443 = vxor.u32 %v227, %v371
        %v444 = vxor.u32 %v228, %v372
        %v445 = vxor.u32 %v229, %v373
        %v446 = vxor.u32 %v230, %v374
        %v447 = vxor.u32 %v231, %v375
        %v448 = vxor.u32 %v232, %v376
        %v449 = vxor.u32 %v233, %v377
        %v450 = vxor.u32 %v234, %v378
        %v451 = vxor.u32 %v235, %v379
        %v452 = vxor.u32 %v236, %v380
        %v453 = vxor.u32 %v237, %v381
        %v454 = vxor.u32 %v238, %v382
        %v455 = vxor.u32 %v239, %v383
        %v456 = vxor.u32 %v240, %v384
        %v457 = vxor.u32 %v241, %v385
        %v458 = vxor.u32 %v242, %v386
        %v459 = vxor.u32 %v243, %v387
        %v460 = vxor.u32 %v244, %v388
        %v461 = vxor.u32 %v245, %v389
        %v462 = vxor.u32 %v246, %v390
        %v463 = vxor.u32 %v247, %v391
        %v464 = vxor.u32 %v248, %v392
        %v465 = vxor.u32 %v249, %v393
        %v466 = vxor.u32 %v250, %v394
        %v467 = vxor.u32 %v251, %v395
        %v468 = vxor.u32 %v252, %v396
        %v469 = vxor.u32 %v253, %v397
        %v470 = vxor.u32 %v254, %v398
        %v471 = vxor.u32 %v255, %v399
        %v472 = vxor.u32 %v256, %v400
        %v473 = vxor.u32 %v257, %v401
        %v474 = vxor.u32 %v258, %v402
        %v475 = vxor.u32 %v259, %v403
        %v476 = vxor.u32 %v260, %v404
        %v477 = vxor.u32 %v261, %v405
        %v478 = vxor.u32 %v262, %v406
        %v479 = vxor.u32 %v263, %v407
        %v480 = vxor.u32 %v264, %v408
        %v481 = vxor.u32 %v265, %v409
        %v482 = vxor.u32 %v266, %v410
        %v483 = vxor.u32 %v267, %v411
        %v484 = vxor.u32 %v268, %v412
        %v485 = vxor.u32 %v269, %v413
        %v486 = vxor.u32 %v270, %v414
        %v487 = vxor.u32 %v271, %v415
        %v488 = vxor.u32 %v272, %v416
        %v489 = vxor.u32 %v273, %v417
        %v490 = vxor.u32 %v274, %v418
        %v491 = vxor.u32 %v275, %v419
        %v492 = vxor.u32 %v276, %v420
        %v493 = vxor.u32 %v277, %v421
        %v494 = vxor.u32 %v278, %v422
        %v495 = vxor.u32 %v279, %v423
        %v496 = vmul.u32 %v424, 2246822507
        %v497 = vmul.u32 %v425, 2246822507
        %v498 = vmul.u32 %v426, 2246822507
        %v499 = vmul.u32 %v427, 2246822507
        %v500 = vmul.u32 %v428, 2246822507
        %v501 = vmul.u32 %v429, 2246822507
        %v502 = vmul.u32 %v430, 2246822507
        %v503 = vmul.u32 %v431, 2246822507
        %v504 = vmul.u32 %v432, 2246822507
        %v505 = vmul.u32 %v433, 2246822507
        %v506 = vmul.u32 %v434, 2246822507
        %v507 = vmul.u32 %v435, 2246822507
        %v508 = vmul.u32 %v436, 2246822507
        %v509 = vmul.u32 %v437, 2246822507
        %v510 = vmul.u32 %v438, 2246822507
        %v511 = vmul.u32 %v439, 2246822507
        %v512 = vmul.u32 %v440, 2246822507
        %v513 = vmul.u32 %v441, 2246822507
        %v514 = vmul.u32 %v442, 2246822507
        %v515 = vmul.u32 %v443, 2246822507
        %v516 = vmul.u32 %v444, 2246822507
        %v517 = vmul.u32 %v445, 2246822507
        %v518 = vmul.u32 %v446, 2246822507
        %v519 = vmul.u32 %v447, 2246822507
        %v520 = vmul.u32 %v448, 2246822507
        %v521 = vmul.u32 %v449, 2246822507
        %v522 = vmul.u32 %v450, 2246822507
        %v523 = vmul.u32 %v451, 2246822507
        %v524 = vmul.u32 %v452, 2246822507
        %v525 = vmul.u32 %v453, 2246822507
        %v526 = vmul.u32 %v454, 2246822507
        %v527 = vmul.u32 %v455, 2246822507
        %v528 = vmul.u32 %v456, 2246822507
        %v529 = vmul.u32 %v457, 2246822507
        %v530 = vmul.u32 %v458, 2246822507
        %v531 = vmul.u32 %v459, 2246822507
        %v532 = vmul.u32 %v460, 2246822507
        %v533 = vmul.u32 %v461, 2246822507
        %v534 = vmul.u32 %v462, 2246822507
        %v535 = vmul.u32 %v463, 2246822507
        %v536 = vmul.u32 %v464, 2246822507
        %v537 = vmul.u32 %v465, 2246822507
        %v538 = vmul.u32 %v466, 2246822507
        %v539 = vmul.u32 %v467, 2246822507
        %v540 = vmul.u32 %v468, 2246822507
        %v541 = vmul.u32 %v469, 2246822507
        %v542 = vmul.u32 %v470, 2246822507
        %v543 = vmul.u32 %v471, 2246822507
        %v544 = vmul.u32 %v472, 2246822507
        %v545 = vmul.u32 %v473, 2246822507
        %v546 = vmul.u32 %v474, 2246822507
        %v547 = vmul.u32 %v475, 2246822507
        %v548 = vmul.u32 %v476, 2246822507
        %v549 = vmul.u32 %v477, 2246822507
        %v550 = vmul.u32 %v478, 2246822507
        %v551 = vmul.u32 %v479, 2246822507
        %v552 = vmul.u32 %v480, 2246822507
        %v553 = vmul.u32 %v481, 2246822507
        %v554 = vmul.u32 %v482, 2246822507
        %v555 = vmul.u32 %v483, 2246822507
        %v556 = vmul.u32 %v484, 2246822507
        %v557 = vmul.u32 %v485, 2246822507
        %v558 = vmul.u32 %v486, 2246822507
        %v559 = vmul.u32 %v487, 2246822507
        %v560 = vmul.u32 %v488, 2246822507
        %v561 = vmul.u32 %v489, 2246822507
        %v562 = vmul.u32 %v490, 2246822507
        %v563 = vmul.u32 %v491, 2246822507
        %v564 = vmul.u32 %v492, 2246822507
        %v565 = vmul.u32 %v493, 2246822507
        %v566 = vmul.u32 %v494, 2246822507
        %v567 = vmul.u32 %v495, 2246822507
        %v568 = vshra.s32 %v496, 13
        %v569 = vshra.s32 %v497, 13
        %v570 = vshra.s32 %v498, 13
        %v571 = vshra.s32 %v499, 13
        %v572 = vshra.s32 %v500, 13
        %v573 = vshra.s32 %v501, 13
        %v574 = vshra.s32 %v502, 13
        %v575 = vshra.s32 %v503, 13
        %v576 = vshra.s32 %v504, 13
        %v577 = vshra.s32 %v505, 13
        %v578 = vshra.s32 %v506, 13
        %v579 = vshra.s32 %v507, 13
        %v580 = vshra.s32 %v508, 13
        %v581 = vshra.s32 %v509, 13
        %v582 = vshra.s32 %v510, 13
        %v583 = vshra.s32 %v511, 13
        %v584 = vshra.s32 %v512, 13
        %v585 = vshra.s32 %v513, 13
        %v586 = vshra.s32 %v514, 13
        %v587 = vshra.s32 %v515, 13
        %v588 = vshra.s32 %v516, 13
        %v589 = vshra.s32 %v517, 13
        %v590 = vshra.s32 %v518, 13
        %v591 = vshra.s32 %v519, 13
        %v592 = vshra.s32 %v520, 13
        %v593 = vshra.s32 %v521, 13
        %v594 = vshra.s32 %v522, 13
        %v595 = vshra.s32 %v523, 13
        %v596 = vshra.s32 %v524, 13
        %v597 = vshra.s32 %v525, 13
        %v598 = vshra.s32 %v526, 13
        %v599 = vshra.s32 %v527, 13
        %v600 = vshra.s32 %v528, 13
        %v601 = vshra.s32 %v529, 13
        %v602 = vshra.s32 %v530, 13
        %v603 = vshra.s32 %v531, 13
        %v604 = vshra.s32 %v532, 13
        %v605 = vshra.s32 %v533, 13
        %v606 = vshra.s32 %v534, 13
        %v607 = vshra.s32 %v535, 13
        %v608 = vshra.s32 %v536, 13
        %v609 = vshra.s32 %v537, 13
        %v610 = vshra.s32 %v538, 13
        %v611 = vshra.s32 %v539, 13
        %v612 = vshra.s32 %v540, 13
        %v613 = vshra.s32 %v541, 13
        %v614 = vshra.s32 %v542, 13
        %v615 = vshra.s32 %v543, 13
        %v616 = vshra.s32 %v544, 13
        %v617 = vshra.s32 %v545, 13
        %v618 = vshra.s32 %v546, 13
        %v619 = vshra.s32 %v547, 13
        %v620 = vshra.s32 %v548, 13
        %v621 = vshra.s32 %v549, 13
        %v622 = vshra.s32 %v550, 13
        %v623 = vshra.s32 %v551, 13
        %v624 = vshra.s32 %v552, 13
        %v625 = vshra.s32 %v553, 13
        %v626 = vshra.s32 %v554, 13
        %v627 = vshra.s32 %v555, 13
        %v628 = vshra.s32 %v556, 13
        %v629 = vshra.s32 %v557, 13
        %v630 = vshra.s32 %v558, 13
        %v631 = vshra.s32 %v559, 13
        %v632 = vshra.s32 %v560, 13
        %v633 = vshra.s32 %v561, 13
        %v634 = vshra.s32 %v562, 13
        %v635 = vshra.s32 %v563, 13
        %v636 = vshra.s32 %v564, 13
        %v637 = vshra.s32 %v565, 13
        %v638 = vshra.s32 %v566, 13
        %v639 = vshra.s32 %v567, 13
        %v640 = vand.u32 %v568, 524287
        %v641 = vand.u32 %v569, 524287
        %v642 = vand.u32 %v570, 524287
        %v643 = vand.u32 %v571, 524287
        %v644 = vand.u32 %v572, 524287
        %v645 = vand.u32 %v573, 524287
        %v646 = vand.u32 %v574, 524287
        %v647 = vand.u32 %v575, 524287
        %v648 = vand.u32 %v576, 524287
        %v649 = vand.u32 %v577, 524287
        %v650 = vand.u32 %v578, 524287
        %v651 = vand.u32 %v579, 524287
        %v652 = vand.u32 %v580, 524287
        %v653 = vand.u32 %v581, 524287
        %v654 = vand.u32 %v582, 524287
        %v655 = vand.u32 %v583, 524287
        %v656 = vand.u32 %v584, 524287
        %v657 = vand.u32 %v585, 524287
        %v658 = vand.u32 %v586, 524287
        %v659 = vand.u32 %v587, 524287
        %v660 = vand.u32 %v588, 524287
        %v661 = vand.u32 %v589, 524287
        %v662 = vand.u32 %v590, 524287
        %v663 = vand.u32 %v591, 524287
        %v664 = vand.u32 %v592, 524287
        %v665 = vand.u32 %v593, 524287
        %v666 = vand.u32 %v594, 524287
        %v667 = vand.u32 %v595, 524287
        %v668 = vand.u32 %v596, 524287
        %v669 = vand.u32 %v597, 524287
        %v670 = vand.u32 %v598, 524287
        %v671 = vand.u32 %v599, 524287
        %v672 = vand.u32 %v600, 524287
        %v673 = vand.u32 %v601, 524287
        %v674 = vand.u32 %v602, 524287
        %v675 = vand.u32 %v603, 524287
        %v676 = vand.u32 %v604, 524287
        %v677 = vand.u32 %v605, 524287
        %v678 = vand.u32 %v606, 524287
        %v679 = vand.u32 %v607, 524287
        %v680 = vand.u32 %v608, 524287
        %v681 = vand.u32 %v609, 524287
        %v682 = vand.u32 %v610, 524287
        %v683 = vand.u32 %v611, 524287
        %v684 = vand.u32 %v612, 524287
        %v685 = vand.u32 %v613, 524287
        %v686 = vand.u32 %v614, 524287
        %v687 = vand.u32 %v615, 524287
        %v688 = vand.u32 %v616, 524287
        %v689 = vand.u32 %v617, 524287
        %v690 = vand.u32 %v618, 524287
        %v691 = vand.u32 %v619, 524287
        %v692 = vand.u32 %v620, 524287
        %v693 = vand.u32 %v621, 524287
        %v694 = vand.u32 %v622, 524287
        %v695 = vand.u32 %v623, 524287
        %v696 = vand.u32 %v624, 524287
        %v697 = vand.u32 %v625, 524287
        %v698 = vand.u32 %v626, 524287
        %v699 = vand.u32 %v627, 524287
        %v700 = vand.u32 %v628, 524287
        %v701 = vand.u32 %v629, 524287
        %v702 = vand.u32 %v630, 524287
        %v703 = vand.u32 %v631, 524287
        %v704 = vand.u32 %v632, 524287
        %v705 = vand.u32 %v633, 524287
        %v706 = vand.u32 %v634, 524287
        %v707 = vand.u32 %v635, 524287
        %v708 = vand.u32 %v636, 524287
        %v709 = vand.u32 %v637, 524287
        %v710 = vand.u32 %v638, 524287
        %v711 = vand.u32 %v639, 524287
        %v712 = vxor.u32 %v496, %v640
        %v713 = vxor.u32 %v497, %v641
        %v714 = vxor.u32 %v498, %v642
        %v715 = vxor.u32 %v499, %v643
        %v716 = vxor.u32 %v500, %v644
        %v717 = vxor.u32 %v501, %v645
        %v718 = vxor.u32 %v502, %v646
        %v719 = vxor.u32 %v503, %v647
        %v720 = vxor.u32 %v504, %v648
        %v721 = vxor.u32 %v505, %v649
        %v722 = vxor.u32 %v506, %v650
        %v723 = vxor.u32 %v507, %v651
        %v724 = vxor.u32 %v508, %v652
        %v725 = vxor.u32 %v509, %v653
        %v726 = vxor.u32 %v510, %v654
        %v727 = vxor.u32 %v511, %v655
        %v728 = vxor.u32 %v512, %v656
        %v729 = vxor.u32 %v513, %v657
        %v730 = vxor.u32 %v514, %v658
        %v731 = vxor.u32 %v515, %v659
        %v732 = vxor.u32 %v516, %v660
        %v733 = vxor.u32 %v517, %v661
        %v734 = vxor.u32 %v518, %v662
        %v735 = vxor.u32 %v519, %v663
        %v736 = vxor.u32 %v520, %v664
        %v737 = vxor.u32 %v521, %v665
        %v738 = vxor.u32 %v522, %v666
        %v739 = vxor.u32 %v523, %v667
        %v740 = vxor.u32 %v524, %v668
        %v741 = vxor.u32 %v525, %v669
        %v742 = vxor.u32 %v526, %v670
        %v743 = vxor.u32 %v527, %v671
        %v744 = vxor.u32 %v528, %v672
        %v745 = vxor.u32 %v529, %v673
        %v746 = vxor.u32 %v530, %v674
        %v747 = vxor.u32 %v531, %v675
        %v748 = vxor.u32 %v532, %v676
        %v749 = vxor.u32 %v533, %v677
        %v750 = vxor.u32 %v534, %v678
        %v751 = vxor.u32 %v535, %v679
        %v752 = vxor.u32 %v536, %v680
        %v753 = vxor.u32 %v537, %v681
        %v754 = vxor.u32 %v538, %v682
        %v755 = vxor.u32 %v539, %v683
        %v756 = vxor.u32 %v540, %v684
        %v757 = vxor.u32 %v541, %v685
        %v758 = vxor.u32 %v542, %v686
        %v759 = vxor.u32 %v543, %v687
        %v760 = vxor.u32 %v544, %v688
        %v761 = vxor.u32 %v545, %v689
        %v762 = vxor.u32 %v546, %v690
        %v763 = vxor.u32 %v547, %v691
        %v764 = vxor.u32 %v548, %v692
        %v765 = vxor.u32 %v549, %v693
        %v766 = vxor.u32 %v550, %v694
        %v767 = vxor.u32 %v551, %v695
        %v768 = vxor.u32 %v552, %v696
        %v769 = vxor.u32 %v553, %v697
        %v770 = vxor.u32 %v554, %v698
        %v771 = vxor.u32 %v555, %v699
        %v772 = vxor.u32 %v556, %v700
        %v773 = vxor.u32 %v557, %v701
        %v774 = vxor.u32 %v558, %v702
        %v775 = vxor.u32 %v559, %v703
        %v776 = vxor.u32 %v560, %v704
        %v777 = vxor.u32 %v561, %v705
        %v778 = vxor.u32 %v562, %v706
        %v779 = vxor.u32 %v563, %v707
        %v780 = vxor.u32 %v564, %v708
        %v781 = vxor.u32 %v565, %v709
        %v782 = vxor.u32 %v566, %v710
        %v783 = vxor.u32 %v567, %v711
        %v784 = vmul.u32 %v712, 3266489909
        %v785 = vmul.u32 %v713, 3266489909
        %v786 = vmul.u32 %v714, 3266489909
        %v787 = vmul.u32 %v715, 3266489909
        %v788 = vmul.u32 %v716, 3266489909
        %v789 = vmul.u32 %v717, 3266489909
        %v790 = vmul.u32 %v718, 3266489909
        %v791 = vmul.u32 %v719, 3266489909
        %v792 = vmul.u32 %v720, 3266489909
        %v793 = vmul.u32 %v721, 3266489909
        %v794 = vmul.u32 %v722, 3266489909
        %v795 = vmul.u32 %v723, 3266489909
        %v796 = vmul.u32 %v724, 3266489909
        %v797 = vmul.u32 %v725, 3266489909
        %v798 = vmul.u32 %v726, 3266489909
        %v799 = vmul.u32 %v727, 3266489909
        %v800 = vmul.u32 %v728, 3266489909
        %v801 = vmul.u32 %v729, 3266489909
        %v802 = vmul.u32 %v730, 3266489909
        %v803 = vmul.u32 %v731, 3266489909
        %v804 = vmul.u32 %v732, 3266489909
        %v805 = vmul.u32 %v733, 3266489909
        %v806 = vmul.u32 %v734, 3266489909
        %v807 = vmul.u32 %v735, 3266489909
        %v808 = vmul.u32 %v736, 3266489909
        %v809 = vmul.u32 %v737, 3266489909
        %v810 = vmul.u32 %v738, 3266489909
        %v811 = vmul.u32 %v739, 3266489909
        %v812 = vmul.u32 %v740, 3266489909
        %v813 = vmul.u32 %v741, 3266489909
        %v814 = vmul.u32 %v742, 3266489909
        %v815 = vmul.u32 %v743, 3266489909
        %v816 = vmul.u32 %v744, 3266489909
        %v817 = vmul.u32 %v745, 3266489909
        %v818 = vmul.u32 %v746, 3266489909
        %v819 = vmul.u32 %v747, 3266489909
        %v820 = vmul.u32 %v748, 3266489909
        %v821 = vmul.u32 %v749, 3266489909
        %v822 = vmul.u32 %v750, 3266489909
        %v823 = vmul.u32 %v751, 3266489909
        %v824 = vmul.u32 %v752, 3266489909
        %v825 = vmul.u32 %v753, 3266489909
        %v826 = vmul.u32 %v754, 3266489909
        %v827 = vmul.u32 %v755, 3266489909
        %v828 = vmul.u32 %v756, 3266489909
        %v829 = vmul.u32 %v757, 3266489909
        %v830 = vmul.u32 %v758, 3266489909
        %v831 = vmul.u32 %v759, 3266489909
        %v832 = vmul.u32 %v760, 3266489909
        %v833 = vmul.u32 %v761, 3266489909
        %v834 = vmul.u32 %v762, 3266489909
        %v835 = vmul.u32 %v763, 3266489909
        %v836 = vmul.u32 %v764, 3266489909
        %v837 = vmul.u32 %v765, 3266489909
        %v838 = vmul.u32 %v766, 3266489909
        %v839 = vmul.u32 %v767, 3266489909
        %v840 = vmul.u32 %v768, 3266489909
        %v841 = vmul.u32 %v769, 3266489909
        %v842 = vmul.u32 %v770, 3266489909
        %v843 = vmul.u32 %v771, 3266489909
        %v844 = vmul.u32 %v772, 3266489909
        %v845 = vmul.u32 %v773, 3266489909
        %v846 = vmul.u32 %v774, 3266489909
        %v847 = vmul.u32 %v775, 3266489909
        %v848 = vmul.u32 %v776, 3266489909
        %v849 = vmul.u32 %v777, 3266489909
        %v850 = vmul.u32 %v778, 3266489909
        %v851 = vmul.u32 %v779, 3266489909
        %v852 = vmul.u32 %v780, 3266489909
        %v853 = vmul.u32 %v781, 3266489909
        %v854 = vmul.u32 %v782, 3266489909
        %v855 = vmul.u32 %v783, 3266489909
        %v856 = vshra.s32 %v784, 16
        %v857 = vshra.s32 %v785, 16
        %v858 = vshra.s32 %v786, 16
        %v859 = vshra.s32 %v787, 16
        %v860 = vshra.s32 %v788, 16
        %v861 = vshra.s32 %v789, 16
        %v862 = vshra.s32 %v790, 16
        %v863 = vshra.s32 %v791, 16
        %v864 = vshra.s32 %v792, 16
        %v865 = vshra.s32 %v793, 16
        %v866 = vshra.s32 %v794, 16
        %v867 = vshra.s32 %v795, 16
        %v868 = vshra.s32 %v796, 16
        %v869 = vshra.s32 %v797, 16
        %v870 = vshra.s32 %v798, 16
        %v871 = vshra.s32 %v799, 16
        %v872 = vshra.s32 %v800, 16
        %v873 = vshra.s32 %v801, 16
        %v874 = vshra.s32 %v802, 16
        %v875 = vshra.s32 %v803, 16
        %v876 = vshra.s32 %v804, 16
        %v877 = vshra.s32 %v805, 16
        %v878 = vshra.s32 %v806, 16
        %v879 = vshra.s32 %v807, 16
        %v880 = vshra.s32 %v808, 16
        %v881 = vshra.s32 %v809, 16
        %v882 = vshra.s32 %v810, 16
        %v883 = vshra.s32 %v811, 16
        %v884 = vshra.s32 %v812, 16
        %v885 = vshra.s32 %v813, 16
        %v886 = vshra.s32 %v814, 16
        %v887 = vshra.s32 %v815, 16
        %v888 = vshra.s32 %v816, 16
        %v889 = vshra.s32 %v817, 16
        %v890 = vshra.s32 %v818, 16
        %v891 = vshra.s32 %v819, 16
        %v892 = vshra.s32 %v820, 16
        %v893 = vshra.s32 %v821, 16
        %v894 = vshra.s32 %v822, 16
        %v895 = vshra.s32 %v823, 16
        %v896 = vshra.s32 %v824, 16
        %v897 = vshra.s32 %v825, 16
        %v898 = vshra.s32 %v826, 16
        %v899 = vshra.s32 %v827, 16
        %v900 = vshra.s32 %v828, 16
        %v901 = vshra.s32 %v829, 16
        %v902 = vshra.s32 %v830, 16
        %v903 = vshra.s32 %v831, 16
        %v904 = vshra.s32 %v832, 16
        %v905 = vshra.s32 %v833, 16
        %v906 = vshra.s32 %v834, 16
        %v907 = vshra.s32 %v835, 16
        %v908 = vshra.s32 %v836, 16
        %v909 = vshra.s32 %v837, 16
        %v910 = vshra.s32 %v838, 16
        %v911 = vshra.s32 %v839, 16
        %v912 = vshra.s32 %v840, 16
        %v913 = vshra.s32 %v841, 16
        %v914 = vshra.s32 %v842, 16
        %v915 = vshra.s32 %v843, 16
        %v916 = vshra.s32 %v844, 16
        %v917 = vshra.s32 %v845, 16
        %v918 = vshra.s32 %v846, 16
        %v919 = vshra.s32 %v847, 16
        %v920 = vshra.s32 %v848, 16
        %v921 = vshra.s32 %v849, 16
        %v922 = vshra.s32 %v850, 16
        %v923 = vshra.s32 %v851, 16
        %v924 = vshra.s32 %v852, 16
        %v925 = vshra.s32 %v853, 16
        %v926 = vshra.s32 %v854, 16
        %v927 = vshra.s32 %v855, 16
        %v928 = vand.u32 %v856, 65535
        %v929 = vand.u32 %v857, 65535
        %v930 = vand.u32 %v858, 65535
        %v931 = vand.u32 %v859, 65535
        %v932 = vand.u32 %v860, 65535
        %v933 = vand.u32 %v861, 65535
        %v934 = vand.u32 %v862, 65535
        %v935 = vand.u32 %v863, 65535
        %v936 = vand.u32 %v864, 65535
        %v937 = vand.u32 %v865, 65535
        %v938 = vand.u32 %v866, 65535
        %v939 = vand.u32 %v867, 65535
        %v940 = vand.u32 %v868, 65535
        %v941 = vand.u32 %v869, 65535
        %v942 = vand.u32 %v870, 65535
        %v943 = vand.u32 %v871, 65535
        %v944 = vand.u32 %v872, 65535
        %v945 = vand.u32 %v873, 65535
        %v946 = vand.u32 %v874, 65535
        %v947 = vand.u32 %v875, 65535
        %v948 = vand.u32 %v876, 65535
        %v949 = vand.u32 %v877, 65535
        %v950 = vand.u32 %v878, 65535
        %v951 = vand.u32 %v879, 65535
        %v952 = vand.u32 %v880, 65535
        %v953 = vand.u32 %v881, 65535
        %v954 = vand.u32 %v882, 65535
        %v955 = vand.u32 %v883, 65535
        %v956 = vand.u32 %v884, 65535
        %v957 = vand.u32 %v885, 65535
        %v958 = vand.u32 %v886, 65535
        %v959 = vand.u32 %v887, 65535
        %v960 = vand.u32 %v888, 65535
        %v961 = vand.u32 %v889, 65535
        %v962 = vand.u32 %v890, 65535
        %v963 = vand.u32 %v891, 65535
        %v964 = vand.u32 %v892, 65535
        %v965 = vand.u32 %v893, 65535
        %v966 = vand.u32 %v894, 65535
        %v967 = vand.u32 %v895, 65535
        %v968 = vand.u32 %v896, 65535
        %v969 = vand.u32 %v897, 65535
        %v970 = vand.u32 %v898, 65535
        %v971 = vand.u32 %v899, 65535
        %v972 = vand.u32 %v900, 65535
        %v973 = vand.u32 %v901, 65535
        %v974 = vand.u32 %v902, 65535
        %v975 = vand.u32 %v903, 65535
        %v976 = vand.u32 %v904, 65535
        %v977 = vand.u32 %v905, 65535
        %v978 = vand.u32 %v906, 65535
        %v979 = vand.u32 %v907, 65535
        %v980 = vand.u32 %v908, 65535
        %v981 = vand.u32 %v909, 65535
        %v982 = vand.u32 %v910, 65535
        %v983 = vand.u32 %v911, 65535
        %v984 = vand.u32 %v912, 65535
        %v985 = vand.u32 %v913, 65535
        %v986 = vand.u32 %v914, 65535
        %v987 = vand.u32 %v915, 65535
        %v988 = vand.u32 %v916, 65535
        %v989 = vand.u32 %v917, 65535
        %v990 = vand.u32 %v918, 65535
        %v991 = vand.u32 %v919, 65535
        %v992 = vand.u32 %v920, 65535
        %v993 = vand.u32 %v921, 65535
        %v994 = vand.u32 %v922, 65535
        %v995 = vand.u32 %v923, 65535
        %v996 = vand.u32 %v924, 65535
        %v997 = vand.u32 %v925, 65535
        %v998 = vand.u32 %v926, 65535
        %v999 = vand.u32 %v927, 65535
        %v1000 = vxor.u32 %v784, %v928
        %v1001 = vxor.u32 %v785, %v929
        %v1002 = vxor.u32 %v786, %v930
        %v1003 = vxor.u32 %v787, %v931
        %v1004 = vxor.u32 %v788, %v932
        %v1005 = vxor.u32 %v789, %v933
        %v1006 = vxor.u32 %v790, %v934
        %v1007 = vxor.u32 %v791, %v935
        %v1008 = vxor.u32 %v792, %v936
        %v1009 = vxor.u32 %v793, %v937
        %v1010 = vxor.u32 %v794, %v938
        %v1011 = vxor.u32 %v795, %v939
        %v1012 = vxor.u32 %v796, %v940
        %v1013 = vxor.u32 %v797, %v941
        %v1014 = vxor.u32 %v798, %v942
        %v1015 = vxor.u32 %v799, %v943
        %v1016 = vxor.u32 %v800, %v944
        %v1017 = vxor.u32 %v801, %v945
        %v1018 = vxor.u32 %v802, %v946
        %v1019 = vxor.u32 %v803, %v947
        %v1020 = vxor.u32 %v804, %v948
        %v1021 = vxor.u32 %v805, %v949
        %v1022 = vxor.u32 %v806, %v950
        %v1023 = vxor.u32 %v807, %v951
        %v1024 = vxor.u32 %v808, %v952
        %v1025 = vxor.u32 %v809, %v953
        %v1026 = vxor.u32 %v810, %v954
        %v1027 = vxor.u32 %v811, %v955
        %v1028 = vxor.u32 %v812, %v956
        %v1029 = vxor.u32 %v813, %v957
        %v1030 = vxor.u32 %v814, %v958
        %v1031 = vxor.u32 %v815, %v959
        %v1032 = vxor.u32 %v816, %v960
        %v1033 = vxor.u32 %v817, %v961
        %v1034 = vxor.u32 %v818, %v962
        %v1035 = vxor.u32 %v819, %v963
        %v1036 = vxor.u32 %v820, %v964
        %v1037 = vxor.u32 %v821, %v965
        %v1038 = vxor.u32 %v822, %v966
        %v1039 = vxor.u32 %v823, %v967
        %v1040 = vxor.u32 %v824, %v968
        %v1041 = vxor.u32 %v825, %v969
        %v1042 = vxor.u32 %v826, %v970
        %v1043 = vxor.u32 %v827, %v971
        %v1044 = vxor.u32 %v828, %v972
        %v1045 = vxor.u32 %v829, %v973
        %v1046 = vxor.u32 %v830, %v974
        %v1047 = vxor.u32 %v831, %v975
        %v1048 = vxor.u32 %v832, %v976
        %v1049 = vxor.u32 %v833, %v977
        %v1050 = vxor.u32 %v834, %v978
        %v1051 = vxor.u32 %v835, %v979
        %v1052 = vxor.u32 %v836, %v980
        %v1053 = vxor.u32 %v837, %v981
        %v1054 = vxor.u32 %v838, %v982
        %v1055 = vxor.u32 %v839, %v983
        %v1056 = vxor.u32 %v840, %v984
        %v1057 = vxor.u32 %v841, %v985
        %v1058 = vxor.u32 %v842, %v986
        %v1059 = vxor.u32 %v843, %v987
        %v1060 = vxor.u32 %v844, %v988
        %v1061 = vxor.u32 %v845, %v989
        %v1062 = vxor.u32 %v846, %v990
        %v1063 = vxor.u32 %v847, %v991
        %v1064 = vxor.u32 %v848, %v992
        %v1065 = vxor.u32 %v849, %v993
        %v1066 = vxor.u32 %v850, %v994
        %v1067 = vxor.u32 %v851, %v995
        %v1068 = vxor.u32 %v852, %v996
        %v1069 = vxor.u32 %v853, %v997
        %v1070 = vxor.u32 %v854, %v998
        %v1071 = vxor.u32 %v855, %v999
        %v1072 = vand.u32 %v1000, 2147483647
        %v1073 = vand.u32 %v1001, 2147483647
        %v1074 = vand.u32 %v1002, 2147483647
        %v1075 = vand.u32 %v1003, 2147483647
        %v1076 = vand.u32 %v1004, 2147483647
        %v1077 = vand.u32 %v1005, 2147483647
        %v1078 = vand.u32 %v1006, 2147483647
        %v1079 = vand.u32 %v1007, 2147483647
        %v1080 = vand.u32 %v1008, 2147483647
        %v1081 = vand.u32 %v1009, 2147483647
        %v1082 = vand.u32 %v1010, 2147483647
        %v1083 = vand.u32 %v1011, 2147483647
        %v1084 = vand.u32 %v1012, 2147483647
        %v1085 = vand.u32 %v1013, 2147483647
        %v1086 = vand.u32 %v1014, 2147483647
        %v1087 = vand.u32 %v1015, 2147483647
        %v1088 = vand.u32 %v1016, 2147483647
        %v1089 = vand.u32 %v1017, 2147483647
        %v1090 = vand.u32 %v1018, 2147483647
        %v1091 = vand.u32 %v1019, 2147483647
        %v1092 = vand.u32 %v1020, 2147483647
        %v1093 = vand.u32 %v1021, 2147483647
        %v1094 = vand.u32 %v1022, 2147483647
        %v1095 = vand.u32 %v1023, 2147483647
        %v1096 = vand.u32 %v1024, 2147483647
        %v1097 = vand.u32 %v1025, 2147483647
        %v1098 = vand.u32 %v1026, 2147483647
        %v1099 = vand.u32 %v1027, 2147483647
        %v1100 = vand.u32 %v1028, 2147483647
        %v1101 = vand.u32 %v1029, 2147483647
        %v1102 = vand.u32 %v1030, 2147483647
        %v1103 = vand.u32 %v1031, 2147483647
        %v1104 = vand.u32 %v1032, 2147483647
        %v1105 = vand.u32 %v1033, 2147483647
        %v1106 = vand.u32 %v1034, 2147483647
        %v1107 = vand.u32 %v1035, 2147483647
        %v1108 = vand.u32 %v1036, 2147483647
        %v1109 = vand.u32 %v1037, 2147483647
        %v1110 = vand.u32 %v1038, 2147483647
        %v1111 = vand.u32 %v1039, 2147483647
        %v1112 = vand.u32 %v1040, 2147483647
        %v1113 = vand.u32 %v1041, 2147483647
        %v1114 = vand.u32 %v1042, 2147483647
        %v1115 = vand.u32 %v1043, 2147483647
        %v1116 = vand.u32 %v1044, 2147483647
        %v1117 = vand.u32 %v1045, 2147483647
        %v1118 = vand.u32 %v1046, 2147483647
        %v1119 = vand.u32 %v1047, 2147483647
        %v1120 = vand.u32 %v1048, 2147483647
        %v1121 = vand.u32 %v1049, 2147483647
        %v1122 = vand.u32 %v1050, 2147483647
        %v1123 = vand.u32 %v1051, 2147483647
        %v1124 = vand.u32 %v1052, 2147483647
        %v1125 = vand.u32 %v1053, 2147483647
        %v1126 = vand.u32 %v1054, 2147483647
        %v1127 = vand.u32 %v1055, 2147483647
        %v1128 = vand.u32 %v1056, 2147483647
        %v1129 = vand.u32 %v1057, 2147483647
        %v1130 = vand.u32 %v1058, 2147483647
        %v1131 = vand.u32 %v1059, 2147483647
        %v1132 = vand.u32 %v1060, 2147483647
        %v1133 = vand.u32 %v1061, 2147483647
        %v1134 = vand.u32 %v1062, 2147483647
        %v1135 = vand.u32 %v1063, 2147483647
        %v1136 = vand.u32 %v1064, 2147483647
        %v1137 = vand.u32 %v1065, 2147483647
        %v1138 = vand.u32 %v1066, 2147483647
        %v1139 = vand.u32 %v1067, 2147483647
        %v1140 = vand.u32 %v1068, 2147483647
        %v1141 = vand.u32 %v1069, 2147483647
        %v1142 = vand.u32 %v1070, 2147483647
        %v1143 = vand.u32 %v1071, 2147483647
        %vm1144 = vcmp.ge.s32.totalorder %v1072, 214748365
        %vm1145 = vcmp.ge.s32.totalorder %v1073, 214748365
        %vm1146 = vcmp.ge.s32.totalorder %v1074, 214748365
        %vm1147 = vcmp.ge.s32.totalorder %v1075, 214748365
        %vm1148 = vcmp.ge.s32.totalorder %v1076, 214748365
        %vm1149 = vcmp.ge.s32.totalorder %v1077, 214748365
        %vm1150 = vcmp.ge.s32.totalorder %v1078, 214748365
        %vm1151 = vcmp.ge.s32.totalorder %v1079, 214748365
        %vm1152 = vcmp.ge.s32.totalorder %v1080, 214748365
        %vm1153 = vcmp.ge.s32.totalorder %v1081, 214748365
        %vm1154 = vcmp.ge.s32.totalorder %v1082, 214748365
        %vm1155 = vcmp.ge.s32.totalorder %v1083, 214748365
        %vm1156 = vcmp.ge.s32.totalorder %v1084, 214748365
        %vm1157 = vcmp.ge.s32.totalorder %v1085, 214748365
        %vm1158 = vcmp.ge.s32.totalorder %v1086, 214748365
        %vm1159 = vcmp.ge.s32.totalorder %v1087, 214748365
        %vm1160 = vcmp.ge.s32.totalorder %v1088, 214748365
        %vm1161 = vcmp.ge.s32.totalorder %v1089, 214748365
        %vm1162 = vcmp.ge.s32.totalorder %v1090, 214748365
        %vm1163 = vcmp.ge.s32.totalorder %v1091, 214748365
        %vm1164 = vcmp.ge.s32.totalorder %v1092, 214748365
        %vm1165 = vcmp.ge.s32.totalorder %v1093, 214748365
        %vm1166 = vcmp.ge.s32.totalorder %v1094, 214748365
        %vm1167 = vcmp.ge.s32.totalorder %v1095, 214748365
        %vm1168 = vcmp.ge.s32.totalorder %v1096, 214748365
        %vm1169 = vcmp.ge.s32.totalorder %v1097, 214748365
        %vm1170 = vcmp.ge.s32.totalorder %v1098, 214748365
        %vm1171 = vcmp.ge.s32.totalorder %v1099, 214748365
        %vm1172 = vcmp.ge.s32.totalorder %v1100, 214748365
        %vm1173 = vcmp.ge.s32.totalorder %v1101, 214748365
        %vm1174 = vcmp.ge.s32.totalorder %v1102, 214748365
        %vm1175 = vcmp.ge.s32.totalorder %v1103, 214748365
        %vm1176 = vcmp.ge.s32.totalorder %v1104, 214748365
        %vm1177 = vcmp.ge.s32.totalorder %v1105, 214748365
        %vm1178 = vcmp.ge.s32.totalorder %v1106, 214748365
        %vm1179 = vcmp.ge.s32.totalorder %v1107, 214748365
        %vm1180 = vcmp.ge.s32.totalorder %v1108, 214748365
        %vm1181 = vcmp.ge.s32.totalorder %v1109, 214748365
        %vm1182 = vcmp.ge.s32.totalorder %v1110, 214748365
        %vm1183 = vcmp.ge.s32.totalorder %v1111, 214748365
        %vm1184 = vcmp.ge.s32.totalorder %v1112, 214748365
        %vm1185 = vcmp.ge.s32.totalorder %v1113, 214748365
        %vm1186 = vcmp.ge.s32.totalorder %v1114, 214748365
        %vm1187 = vcmp.ge.s32.totalorder %v1115, 214748365
        %vm1188 = vcmp.ge.s32.totalorder %v1116, 214748365
        %vm1189 = vcmp.ge.s32.totalorder %v1117, 214748365
        %vm1190 = vcmp.ge.s32.totalorder %v1118, 214748365
        %vm1191 = vcmp.ge.s32.totalorder %v1119, 214748365
        %vm1192 = vcmp.ge.s32.totalorder %v1120, 214748365
        %vm1193 = vcmp.ge.s32.totalorder %v1121, 214748365
        %vm1194 = vcmp.ge.s32.totalorder %v1122, 214748365
        %vm1195 = vcmp.ge.s32.totalorder %v1123, 214748365
        %vm1196 = vcmp.ge.s32.totalorder %v1124, 214748365
        %vm1197 = vcmp.ge.s32.totalorder %v1125, 214748365
        %vm1198 = vcmp.ge.s32.totalorder %v1126, 214748365
        %vm1199 = vcmp.ge.s32.totalorder %v1127, 214748365
        %vm1200 = vcmp.ge.s32.totalorder %v1128, 214748365
        %vm1201 = vcmp.ge.s32.totalorder %v1129, 214748365
        %vm1202 = vcmp.ge.s32.totalorder %v1130, 214748365
        %vm1203 = vcmp.ge.s32.totalorder %v1131, 214748365
        %vm1204 = vcmp.ge.s32.totalorder %v1132, 214748365
        %vm1205 = vcmp.ge.s32.totalorder %v1133, 214748365
        %vm1206 = vcmp.ge.s32.totalorder %v1134, 214748365
        %vm1207 = vcmp.ge.s32.totalorder %v1135, 214748365
        %vm1208 = vcmp.ge.s32.totalorder %v1136, 214748365
        %vm1209 = vcmp.ge.s32.totalorder %v1137, 214748365
        %vm1210 = vcmp.ge.s32.totalorder %v1138, 214748365
        %vm1211 = vcmp.ge.s32.totalorder %v1139, 214748365
        %vm1212 = vcmp.ge.s32.totalorder %v1140, 214748365
        %vm1213 = vcmp.ge.s32.totalorder %v1141, 214748365
        %vm1214 = vcmp.ge.s32.totalorder %v1142, 214748365
        %vm1215 = vcmp.ge.s32.totalorder %v1143, 214748365
        %v1216 = vld [vmem:[%s119] sm:$0xff]
        %v1217 = vld [vmem:[%s119 + $0x8] sm:$0xff]
        %v1218 = vld [vmem:[%s119 + $0x10] sm:$0xff]
        %v1219 = vld [vmem:[%s119 + $0x18] sm:$0xff]
        %v1220 = vld [vmem:[%s119 + $0x20] sm:$0xff]
        %v1221 = vld [vmem:[%s119 + $0x28] sm:$0xff]
        %v1222 = vld [vmem:[%s119 + $0x30] sm:$0xff]
        %v1223 = vld [vmem:[%s119 + $0x38] sm:$0xff]
        %v1224 = vld [vmem:[%s119 + $0x40] sm:$0xff]
        %v1225 = vld [vmem:[%s119 + $0x48] sm:$0xff]
        %v1226 = vld [vmem:[%s119 + $0x50] sm:$0xff]
        %v1227 = vld [vmem:[%s119 + $0x58] sm:$0xff]
        %v1228 = vld [vmem:[%s119 + $0x60] sm:$0xff]
        %v1229 = vld [vmem:[%s119 + $0x68] sm:$0xff]
        %v1230 = vld [vmem:[%s119 + $0x70] sm:$0xff]
        %v1231 = vld [vmem:[%s119 + $0x78] sm:$0xff]
        %v1232 = vld [vmem:[%s119 + $0x80] sm:$0xff]
        %v1233 = vld [vmem:[%s119 + $0x88] sm:$0xff]
        %v1234 = vld [vmem:[%s119 + $0x90] sm:$0xff]
        %v1235 = vld [vmem:[%s119 + $0x98] sm:$0xff]
        %v1236 = vld [vmem:[%s119 + $0xa0] sm:$0xff]
        %v1237 = vld [vmem:[%s119 + $0xa8] sm:$0xff]
        %v1238 = vld [vmem:[%s119 + $0xb0] sm:$0xff]
        %v1239 = vld [vmem:[%s119 + $0xb8] sm:$0xff]
        %v1240 = vld [vmem:[%s119 + $0xc0] sm:$0xff]
        %v1241 = vld [vmem:[%s119 + $0xc8] sm:$0xff]
        %v1242 = vld [vmem:[%s119 + $0xd0] sm:$0xff]
        %v1243 = vld [vmem:[%s119 + $0xd8] sm:$0xff]
        %v1244 = vld [vmem:[%s119 + $0xe0] sm:$0xff]
        %v1245 = vld [vmem:[%s119 + $0xe8] sm:$0xff]
        %v1246 = vld [vmem:[%s119 + $0xf0] sm:$0xff]
        %v1247 = vld [vmem:[%s119 + $0xf8] sm:$0xff]
        %v1248 = vld [vmem:[%s119 + $0x100] sm:$0xff]
        %v1249 = vld [vmem:[%s119 + $0x108] sm:$0xff]
        %v1250 = vld [vmem:[%s119 + $0x110] sm:$0xff]
        %v1251 = vld [vmem:[%s119 + $0x118] sm:$0xff]
        %v1252 = vld [vmem:[%s119 + $0x120] sm:$0xff]
        %v1253 = vld [vmem:[%s119 + $0x128] sm:$0xff]
        %v1254 = vld [vmem:[%s119 + $0x130] sm:$0xff]
        %v1255 = vld [vmem:[%s119 + $0x138] sm:$0xff]
        %v1256 = vld [vmem:[%s119 + $0x140] sm:$0xff]
        %v1257 = vld [vmem:[%s119 + $0x148] sm:$0xff]
        %v1258 = vld [vmem:[%s119 + $0x150] sm:$0xff]
        %v1259 = vld [vmem:[%s119 + $0x158] sm:$0xff]
        %v1260 = vld [vmem:[%s119 + $0x160] sm:$0xff]
        %v1261 = vld [vmem:[%s119 + $0x168] sm:$0xff]
        %v1262 = vld [vmem:[%s119 + $0x170] sm:$0xff]
        %v1263 = vld [vmem:[%s119 + $0x178] sm:$0xff]
        %v1264 = vld [vmem:[%s119 + $0x180] sm:$0xff]
        %v1265 = vld [vmem:[%s119 + $0x188] sm:$0xff]
        %v1266 = vld [vmem:[%s119 + $0x190] sm:$0xff]
        %v1267 = vld [vmem:[%s119 + $0x198] sm:$0xff]
        %v1268 = vld [vmem:[%s119 + $0x1a0] sm:$0xff]
        %v1269 = vld [vmem:[%s119 + $0x1a8] sm:$0xff]
        %v1270 = vld [vmem:[%s119 + $0x1b0] sm:$0xff]
        %v1271 = vld [vmem:[%s119 + $0x1b8] sm:$0xff]
        %v1272 = vld [vmem:[%s119 + $0x1c0] sm:$0xff]
        %v1273 = vld [vmem:[%s119 + $0x1c8] sm:$0xff]
        %v1274 = vld [vmem:[%s119 + $0x1d0] sm:$0xff]
        %v1275 = vld [vmem:[%s119 + $0x1d8] sm:$0xff]
        %v1276 = vld [vmem:[%s119 + $0x1e0] sm:$0xff]
        %v1277 = vld [vmem:[%s119 + $0x1e8] sm:$0xff]
        %v1278 = vld [vmem:[%s119 + $0x1f0] sm:$0xff]
        %v1279 = vld [vmem:[%s119 + $0x1f8] sm:$0xff]
        %v1280 = vld [vmem:[%s119 + $0x200] sm:$0xff]
        %v1281 = vld [vmem:[%s119 + $0x208] sm:$0xff]
        %v1282 = vld [vmem:[%s119 + $0x210] sm:$0xff]
        %v1283 = vld [vmem:[%s119 + $0x218] sm:$0xff]
        %v1284 = vld [vmem:[%s119 + $0x220] sm:$0xff]
        %v1285 = vld [vmem:[%s119 + $0x228] sm:$0xff]
        %v1286 = vld [vmem:[%s119 + $0x230] sm:$0xff]
        %v1287 = vld [vmem:[%s119 + $0x238] sm:$0xff]
        %v1288 = vmul.f32 %v1216, 1.1111112
        %v1289 = vmul.f32 %v1217, 1.1111112
        %v1290 = vmul.f32 %v1218, 1.1111112
        %v1291 = vmul.f32 %v1219, 1.1111112
        %v1292 = vmul.f32 %v1220, 1.1111112
        %v1293 = vmul.f32 %v1221, 1.1111112
        %v1294 = vmul.f32 %v1222, 1.1111112
        %v1295 = vmul.f32 %v1223, 1.1111112
        %v1296 = vmul.f32 %v1224, 1.1111112
        %v1297 = vmul.f32 %v1225, 1.1111112
        %v1298 = vmul.f32 %v1226, 1.1111112
        %v1299 = vmul.f32 %v1227, 1.1111112
        %v1300 = vmul.f32 %v1228, 1.1111112
        %v1301 = vmul.f32 %v1229, 1.1111112
        %v1302 = vmul.f32 %v1230, 1.1111112
        %v1303 = vmul.f32 %v1231, 1.1111112
        %v1304 = vmul.f32 %v1232, 1.1111112
        %v1305 = vmul.f32 %v1233, 1.1111112
        %v1306 = vmul.f32 %v1234, 1.1111112
        %v1307 = vmul.f32 %v1235, 1.1111112
        %v1308 = vmul.f32 %v1236, 1.1111112
        %v1309 = vmul.f32 %v1237, 1.1111112
        %v1310 = vmul.f32 %v1238, 1.1111112
        %v1311 = vmul.f32 %v1239, 1.1111112
        %v1312 = vmul.f32 %v1240, 1.1111112
        %v1313 = vmul.f32 %v1241, 1.1111112
        %v1314 = vmul.f32 %v1242, 1.1111112
        %v1315 = vmul.f32 %v1243, 1.1111112
        %v1316 = vmul.f32 %v1244, 1.1111112
        %v1317 = vmul.f32 %v1245, 1.1111112
        %v1318 = vmul.f32 %v1246, 1.1111112
        %v1319 = vmul.f32 %v1247, 1.1111112
        %v1320 = vmul.f32 %v1248, 1.1111112
        %v1321 = vmul.f32 %v1249, 1.1111112
        %v1322 = vmul.f32 %v1250, 1.1111112
        %v1323 = vmul.f32 %v1251, 1.1111112
        %v1324 = vmul.f32 %v1252, 1.1111112
        %v1325 = vmul.f32 %v1253, 1.1111112
        %v1326 = vmul.f32 %v1254, 1.1111112
        %v1327 = vmul.f32 %v1255, 1.1111112
        %v1328 = vmul.f32 %v1256, 1.1111112
        %v1329 = vmul.f32 %v1257, 1.1111112
        %v1330 = vmul.f32 %v1258, 1.1111112
        %v1331 = vmul.f32 %v1259, 1.1111112
        %v1332 = vmul.f32 %v1260, 1.1111112
        %v1333 = vmul.f32 %v1261, 1.1111112
        %v1334 = vmul.f32 %v1262, 1.1111112
        %v1335 = vmul.f32 %v1263, 1.1111112
        %v1336 = vmul.f32 %v1264, 1.1111112
        %v1337 = vmul.f32 %v1265, 1.1111112
        %v1338 = vmul.f32 %v1266, 1.1111112
        %v1339 = vmul.f32 %v1267, 1.1111112
        %v1340 = vmul.f32 %v1268, 1.1111112
        %v1341 = vmul.f32 %v1269, 1.1111112
        %v1342 = vmul.f32 %v1270, 1.1111112
        %v1343 = vmul.f32 %v1271, 1.1111112
        %v1344 = vmul.f32 %v1272, 1.1111112
        %v1345 = vmul.f32 %v1273, 1.1111112
        %v1346 = vmul.f32 %v1274, 1.1111112
        %v1347 = vmul.f32 %v1275, 1.1111112
        %v1348 = vmul.f32 %v1276, 1.1111112
        %v1349 = vmul.f32 %v1277, 1.1111112
        %v1350 = vmul.f32 %v1278, 1.1111112
        %v1351 = vmul.f32 %v1279, 1.1111112
        %v1352 = vmul.f32 %v1280, 1.1111112
        %v1353 = vmul.f32 %v1281, 1.1111112
        %v1354 = vmul.f32 %v1282, 1.1111112
        %v1355 = vmul.f32 %v1283, 1.1111112
        %v1356 = vmul.f32 %v1284, 1.1111112
        %v1357 = vmul.f32 %v1285, 1.1111112
        %v1358 = vmul.f32 %v1286, 1.1111112
        %v1359 = vmul.f32 %v1287, 1.1111112
        %v1360 = vsel %vm1144, %v1288, 0.0
        %v1361 = vsel %vm1145, %v1289, 0.0
        %v1362 = vsel %vm1146, %v1290, 0.0
        %v1363 = vsel %vm1147, %v1291, 0.0
        %v1364 = vsel %vm1148, %v1292, 0.0
        %v1365 = vsel %vm1149, %v1293, 0.0
        %v1366 = vsel %vm1150, %v1294, 0.0
        %v1367 = vsel %vm1151, %v1295, 0.0
        %v1368 = vsel %vm1152, %v1296, 0.0
        %v1369 = vsel %vm1153, %v1297, 0.0
        %v1370 = vsel %vm1154, %v1298, 0.0
        %v1371 = vsel %vm1155, %v1299, 0.0
        %v1372 = vsel %vm1156, %v1300, 0.0
        %v1373 = vsel %vm1157, %v1301, 0.0
        %v1374 = vsel %vm1158, %v1302, 0.0
        %v1375 = vsel %vm1159, %v1303, 0.0
        %v1376 = vsel %vm1160, %v1304, 0.0
        %v1377 = vsel %vm1161, %v1305, 0.0
        %v1378 = vsel %vm1162, %v1306, 0.0
        %v1379 = vsel %vm1163, %v1307, 0.0
        %v1380 = vsel %vm1164, %v1308, 0.0
        %v1381 = vsel %vm1165, %v1309, 0.0
        %v1382 = vsel %vm1166, %v1310, 0.0
        %v1383 = vsel %vm1167, %v1311, 0.0
        %v1384 = vsel %vm1168, %v1312, 0.0
        %v1385 = vsel %vm1169, %v1313, 0.0
        %v1386 = vsel %vm1170, %v1314, 0.0
        %v1387 = vsel %vm1171, %v1315, 0.0
        %v1388 = vsel %vm1172, %v1316, 0.0
        %v1389 = vsel %vm1173, %v1317, 0.0
        %v1390 = vsel %vm1174, %v1318, 0.0
        %v1391 = vsel %vm1175, %v1319, 0.0
        %v1392 = vsel %vm1176, %v1320, 0.0
        %v1393 = vsel %vm1177, %v1321, 0.0
        %v1394 = vsel %vm1178, %v1322, 0.0
        %v1395 = vsel %vm1179, %v1323, 0.0
        %v1396 = vsel %vm1180, %v1324, 0.0
        %v1397 = vsel %vm1181, %v1325, 0.0
        %v1398 = vsel %vm1182, %v1326, 0.0
        %v1399 = vsel %vm1183, %v1327, 0.0
        %v1400 = vsel %vm1184, %v1328, 0.0
        %v1401 = vsel %vm1185, %v1329, 0.0
        %v1402 = vsel %vm1186, %v1330, 0.0
        %v1403 = vsel %vm1187, %v1331, 0.0
        %v1404 = vsel %vm1188, %v1332, 0.0
        %v1405 = vsel %vm1189, %v1333, 0.0
        %v1406 = vsel %vm1190, %v1334, 0.0
        %v1407 = vsel %vm1191, %v1335, 0.0
        %v1408 = vsel %vm1192, %v1336, 0.0
        %v1409 = vsel %vm1193, %v1337, 0.0
        %v1410 = vsel %vm1194, %v1338, 0.0
        %v1411 = vsel %vm1195, %v1339, 0.0
        %v1412 = vsel %vm1196, %v1340, 0.0
        %v1413 = vsel %vm1197, %v1341, 0.0
        %v1414 = vsel %vm1198, %v1342, 0.0
        %v1415 = vsel %vm1199, %v1343, 0.0
        %v1416 = vsel %vm1200, %v1344, 0.0
        %v1417 = vsel %vm1201, %v1345, 0.0
        %v1418 = vsel %vm1202, %v1346, 0.0
        %v1419 = vsel %vm1203, %v1347, 0.0
        %v1420 = vsel %vm1204, %v1348, 0.0
        %v1421 = vsel %vm1205, %v1349, 0.0
        %v1422 = vsel %vm1206, %v1350, 0.0
        %v1423 = vsel %vm1207, %v1351, 0.0
        %v1424 = vsel %vm1208, %v1352, 0.0
        %v1425 = vsel %vm1209, %v1353, 0.0
        %v1426 = vsel %vm1210, %v1354, 0.0
        %v1427 = vsel %vm1211, %v1355, 0.0
        %v1428 = vsel %vm1212, %v1356, 0.0
        %v1429 = vsel %vm1213, %v1357, 0.0
        %v1430 = vsel %vm1214, %v1358, 0.0
        %v1431 = vsel %vm1215, %v1359, 0.0
        %1432 = vst [vmem:[%s137] sm:$0xff] %v1360
        %1433 = vst [vmem:[%s137 + $0x8] sm:$0xff] %v1361
        %1434 = vst [vmem:[%s137 + $0x10] sm:$0xff] %v1362
        %1435 = vst [vmem:[%s137 + $0x18] sm:$0xff] %v1363
        %1436 = vst [vmem:[%s137 + $0x20] sm:$0xff] %v1364
        %1437 = vst [vmem:[%s137 + $0x28] sm:$0xff] %v1365
        %1438 = vst [vmem:[%s137 + $0x30] sm:$0xff] %v1366
        %1439 = vst [vmem:[%s137 + $0x38] sm:$0xff] %v1367
        %1440 = vst [vmem:[%s137 + $0x40] sm:$0xff] %v1368
        %1441 = vst [vmem:[%s137 + $0x48] sm:$0xff] %v1369
        %1442 = vst [vmem:[%s137 + $0x50] sm:$0xff] %v1370
        %1443 = vst [vmem:[%s137 + $0x58] sm:$0xff] %v1371
        %1444 = vst [vmem:[%s137 + $0x60] sm:$0xff] %v1372
        %1445 = vst [vmem:[%s137 + $0x68] sm:$0xff] %v1373
        %1446 = vst [vmem:[%s137 + $0x70] sm:$0xff] %v1374
        %1447 = vst [vmem:[%s137 + $0x78] sm:$0xff] %v1375
        %1448 = vst [vmem:[%s137 + $0x80] sm:$0xff] %v1376
        %1449 = vst [vmem:[%s137 + $0x88] sm:$0xff] %v1377
        %1450 = vst [vmem:[%s137 + $0x90] sm:$0xff] %v1378
        %1451 = vst [vmem:[%s137 + $0x98] sm:$0xff] %v1379
        %1452 = vst [vmem:[%s137 + $0xa0] sm:$0xff] %v1380
        %1453 = vst [vmem:[%s137 + $0xa8] sm:$0xff] %v1381
        %1454 = vst [vmem:[%s137 + $0xb0] sm:$0xff] %v1382
        %1455 = vst [vmem:[%s137 + $0xb8] sm:$0xff] %v1383
        %1456 = vst [vmem:[%s137 + $0xc0] sm:$0xff] %v1384
        %1457 = vst [vmem:[%s137 + $0xc8] sm:$0xff] %v1385
        %1458 = vst [vmem:[%s137 + $0xd0] sm:$0xff] %v1386
        %1459 = vst [vmem:[%s137 + $0xd8] sm:$0xff] %v1387
        %1460 = vst [vmem:[%s137 + $0xe0] sm:$0xff] %v1388
        %1461 = vst [vmem:[%s137 + $0xe8] sm:$0xff] %v1389
        %1462 = vst [vmem:[%s137 + $0xf0] sm:$0xff] %v1390
        %1463 = vst [vmem:[%s137 + $0xf8] sm:$0xff] %v1391
        %1464 = vst [vmem:[%s137 + $0x100] sm:$0xff] %v1392
        %1465 = vst [vmem:[%s137 + $0x108] sm:$0xff] %v1393
        %1466 = vst [vmem:[%s137 + $0x110] sm:$0xff] %v1394
        %1467 = vst [vmem:[%s137 + $0x118] sm:$0xff] %v1395
        %1468 = vst [vmem:[%s137 + $0x120] sm:$0xff] %v1396
        %1469 = vst [vmem:[%s137 + $0x128] sm:$0xff] %v1397
        %1470 = vst [vmem:[%s137 + $0x130] sm:$0xff] %v1398
        %1471 = vst [vmem:[%s137 + $0x138] sm:$0xff] %v1399
        %1472 = vst [vmem:[%s137 + $0x140] sm:$0xff] %v1400
        %1473 = vst [vmem:[%s137 + $0x148] sm:$0xff] %v1401
        %1474 = vst [vmem:[%s137 + $0x150] sm:$0xff] %v1402
        %1475 = vst [vmem:[%s137 + $0x158] sm:$0xff] %v1403
        %1476 = vst [vmem:[%s137 + $0x160] sm:$0xff] %v1404
        %1477 = vst [vmem:[%s137 + $0x168] sm:$0xff] %v1405
        %1478 = vst [vmem:[%s137 + $0x170] sm:$0xff] %v1406
        %1479 = vst [vmem:[%s137 + $0x178] sm:$0xff] %v1407
        %1480 = vst [vmem:[%s137 + $0x180] sm:$0xff] %v1408
        %1481 = vst [vmem:[%s137 + $0x188] sm:$0xff] %v1409
        %1482 = vst [vmem:[%s137 + $0x190] sm:$0xff] %v1410
        %1483 = vst [vmem:[%s137 + $0x198] sm:$0xff] %v1411
        %1484 = vst [vmem:[%s137 + $0x1a0] sm:$0xff] %v1412
        %1485 = vst [vmem:[%s137 + $0x1a8] sm:$0xff] %v1413
        %1486 = vst [vmem:[%s137 + $0x1b0] sm:$0xff] %v1414
        %1487 = vst [vmem:[%s137 + $0x1b8] sm:$0xff] %v1415
        %1488 = vst [vmem:[%s137 + $0x1c0] sm:$0xff] %v1416
        %1489 = vst [vmem:[%s137 + $0x1c8] sm:$0xff] %v1417
        %1490 = vst [vmem:[%s137 + $0x1d0] sm:$0xff] %v1418
        %1491 = vst [vmem:[%s137 + $0x1d8] sm:$0xff] %v1419
        %1492 = vst [vmem:[%s137 + $0x1e0] sm:$0xff] %v1420
        %1493 = vst [vmem:[%s137 + $0x1e8] sm:$0xff] %v1421
        %1494 = vst [vmem:[%s137 + $0x1f0] sm:$0xff] %v1422
        %1495 = vst [vmem:[%s137 + $0x1f8] sm:$0xff] %v1423
        %1496 = vst [vmem:[%s137 + $0x200] sm:$0xff] %v1424
        %1497 = vst [vmem:[%s137 + $0x208] sm:$0xff] %v1425
        %1498 = vst [vmem:[%s137 + $0x210] sm:$0xff] %v1426
        %1499 = vst [vmem:[%s137 + $0x218] sm:$0xff] %v1427
        %1500 = vst [vmem:[%s137 + $0x220] sm:$0xff] %v1428
        %1501 = vst [vmem:[%s137 + $0x228] sm:$0xff] %v1429
        %1502 = vst [vmem:[%s137 + $0x230] sm:$0xff] %v1430
        %1503 = vst [vmem:[%s137 + $0x238] sm:$0xff] %v1431
        %s1504 = sand.u32 %s54, 1
        %s1505 = scalar_lea.sflag [#allocation6], %s1504
        %s1506 = sand.u32 %s54, 1
        %s1507 = smul.addr %s1506, 576
        %s1508 = scalar_lea.vmem [#allocation7], %s1507
        // Predicated region
        $region29: #{tpu_custom_call.1} parent=23 // pred_check
          %p1509 = pneg %p64
        $region30: #{tpu_custom_call.1} parent=23 // pred_check_branch
          %1511 = sbr.rel (%p1509) target = $region32
        $region31: #{tpu_custom_call.1} parent=23 // pred_region
          %s1512 = smul.u32 12, %s20
          %s1514 = ssub.s32 9216, 9216
          %1515 = vsyncadd %s1505, %s1514
          %s1516 = smul.addr %s1512, 6
          %s1517 = smul.addr %s1516, 128
          %s1518 = scalar_lea.hbm %s2, %s1517
          %s1519 = sshll.u32 %s1508, 4
          %s1520 = int_to_ptr.vmem [resolvable:$true] %s1519
          %1525 = dma.vmem_to_hbm [thread:$0]  %s1520, 9216, %s1518, %s1505, 768, 768, 48
        $region32: #{tpu_custom_call.1} parent=23 // pred_fallthru
          _
      $region24: #{tpu_custom_call.1} parent=5 // pred_fallthru
        _
      %p1526 = scmp.le.s32.totalorder 2, %s15
      // Predicated region
      $region33: #{tpu_custom_call.1} parent=5 // pred_check
        %p1527 = pneg %p1526
      $region34: #{tpu_custom_call.1} parent=5 // pred_check_branch
        %1529 = sbr.rel (%p1527) target = $region36
      $region35: #{tpu_custom_call.1} parent=5 // pred_region
        %s1530 = ssub.s32 %s15, 2
        // Predicated region
        $region37: #{tpu_custom_call.1} parent=35 // pred_check
          %p1531 = pneg %p70
        $region38: #{tpu_custom_call.1} parent=35 // pred_check_branch
          %1533 = sbr.rel (%p1531) target = $region40
        $region39: #{tpu_custom_call.1} parent=35 // pred_region
          %s1534 = sand.u32 %s55, 1
          %s1535 = scalar_lea.sflag [#allocation6], %s1534
          %s1536 = sand.u32 %s55, 1
          %s1537 = smul.addr %s1536, 576
          %s1538 = scalar_lea.vmem [#allocation7], %s1537
          %1539 = dma.done %s1535, 9216
        $region40: #{tpu_custom_call.1} parent=35 // pred_fallthru
          _
      $region36: #{tpu_custom_call.1} parent=5 // pred_fallthru
        _
    $region6: #{tpu_custom_call.1} parent=1 // loop_footer
      %s19 = sadd.s32 1, %s15
    $region7: #{tpu_custom_call.1} parent=1 // loop_footer_branch
      %14 = sbr.rel target = $region3
    $region8: #{tpu_custom_call.1} parent=1 // loop_exit
      _
    %1540 = vsyncpa [#allocation5], 1
    %s1541 = scalar_lea.sflag [#allocation5], 1
    %1542 = vsyncpa %s1541, 1
    %1543 = vsyncpa [#allocation6], 1
    %s1544 = scalar_lea.sflag [#allocation6], 1
    %1545 = vsyncpa %s1544, 1

</llo_original>
